<compile_context>
chip_gen: v6e
topology: v6e:2x2x1
jax: 0.10.0
libtpu: 0.0.40
codegen_flags: <defaults>
</compile_context>

<pallas_src>
import functools

import jax
import jax.numpy as jnp
import numpy as np
from jax import lax
from jax.experimental import pallas as pl
from jax.experimental.pallas import tpu as pltpu


def _leaky(x, alpha):
    if 0.0 < alpha < 1.0:
        return jnp.maximum(x, alpha * x)          # 2 VALU ops
    return jnp.where(x > 0, x, alpha * x)


def _mm(a, b, cd):
    """2-D matmul with optional bf16 operands, f32 accumulation."""
    return jnp.dot(a.astype(cd), b.astype(cd), preferred_element_type=jnp.float32)


# ----------------------------------------------------------------------------
# Fused Pallas kernel: all message-passing steps + latent projection + node-mean
# ----------------------------------------------------------------------------
def _encoder_kernel(x_ref, *refs, structure, alphas, compute_dtype):
    """One TB-sized batch block per grid step.

    x_ref : (TB, N, D) input node features
    refs  : flattened parameters for every MP step, then (fW_padded, fb_padded),
            then the output ref (TB, 1, Lpad).
    structure : tuple of (E0, n_edge_rest, n_node_rest) per MP step (static).
    alphas    : tuple of leaky-relu slopes per MP step (static).
    """
    out_ref = refs[-1]
    p = refs[:-1]
    cd = compute_dtype

    h = x_ref[...].astype(jnp.float32)            # (TB, N, D)
    TB, N, _ = h.shape

    idx = 0
    for (E0, n_edge_rest, n_node_rest), alpha in zip(structure, alphas):
        eWab = p[idx][...]; eWd = p[idx + 1][...]; eb0 = p[idx + 2][...]
        idx += 3
        edge_rest = [(p[idx + 2 * r][...], p[idx + 2 * r + 1][...])
                     for r in range(n_edge_rest)]
        idx += 2 * n_edge_rest
        nWcat = p[idx][...]; nb0 = p[idx + 1][...]
        idx += 2
        node_rest = [(p[idx + 2 * r][...], p[idx + 2 * r + 1][...])
                     for r in range(n_node_rest)]
        idx += 2 * n_node_rest

        D = h.shape[-1]
        hf = h.reshape(TB * N, D)

        # pairwise Euclidean ("cartesian") distance via Gram identity (batched MXU matmul)
        hc = h.astype(cd)
        G = lax.dot_general(hc, hc, (((2,), (2,)), ((0,), (0,))),
                            preferred_element_type=jnp.float32)          # (TB, N, N)
        r2 = jnp.sum(h * h, axis=-1)                                      # (TB, N)
        d2 = r2[:, :, None] + r2[:, None, :] - 2.0 * G
        dist = jnp.sqrt(jnp.maximum(d2, 0.0))                             # (TB, N, N)

        # first edge layer, fused + decomposed per-node then broadcast:
        #   concat(x_i, x_j, d_ij) @ W0 == (x@[Wa|Wb])[i,:E0] + (x@[Wa|Wb])[j,E0:] + d_ij*wd
        xab = _mm(hf, eWab, cd).reshape(TB, N, 2 * E0)
        xa = xab[:, :, :E0]
        xb = xab[:, :, E0:]
        e = (xa[:, :, None, :] + xb[:, None, :, :]
             + dist[..., None] * eWd + eb0)                               # (TB, N, N, E0)
        e = _leaky(e, alpha)

        ef = e.reshape(TB * N * N, E0)
        for W, b in edge_rest:
            ef = _leaky(_mm(ef, W, cd) + b, alpha)
        E_out = ef.shape[-1]

        # sum-aggregation over neighbours j: reshape + sublane-sum (no O(N^3) matmul)
        agg = jnp.sum(ef.reshape(TB, N, N, E_out), axis=2)                # (TB, N, E_out)

        # node MLP on concat(x, agg); first layer fused into a single matmul
        gin = jnp.concatenate([hf, agg.reshape(TB * N, E_out)], axis=-1)  # (TB*N, D+E_out)
        g = _leaky(_mm(gin, nWcat, cd) + nb0, alpha)
        for W, b in node_rest:
            g = _leaky(_mm(g, W, cd) + b, alpha)
        h = g.reshape(TB, N, -1)

    # final latent projection + Encoder's mean over nodes, using linearity:
    #   mean_n(h @ W + b) == mean_n(h) @ W + b
    fW = p[idx][...]; fb = p[idx + 1][...]
    hm = jnp.sum(h, axis=1) * (1.0 / N)                                   # (TB, Df)
    y = _mm(hm, fW, cd) + fb                                              # (TB, Lpad) lane-dense
    out_ref[...] = y[:, None, :].astype(out_ref.dtype)


# ----------------------------------------------------------------------------
# Batch tile selection
# ----------------------------------------------------------------------------
def _choose_tb(B, per_elem_bytes, budget=16 << 20):
    divs = [d for d in range(1, B + 1) if B % d == 0]
    fit = [d for d in divs if d * per_elem_bytes <= budget] or [1]
    tb = max(fit)
    # keep >= 2 grid steps so both v7x TensorCores get work under "parallel"
    if B // tb < 2:
        smaller = [d for d in fit if B // d >= 2]
        if smaller:
            tb = max(smaller)
    return tb


# ----------------------------------------------------------------------------
# Wrapper
# ----------------------------------------------------------------------------
def encoder_forward(params, x, alphas, metric='cartesian', use_bf16=False):
    """Encoder.forward: GraphNet encoder, then mean over dim=-2 and unsqueeze(0)."""
    if metric != 'cartesian':
        raise NotImplementedError("only the 'cartesian' metric is implemented")
        # TODO(synk): minkowski metric variant not implemented.
    # TODO(synk): BatchNorm of the (unavailable) GraphNet source is omitted; dropout is
    # identity at inference.
    B, N, D = x.shape

    flat, structure = [], []
    max_w = 1
    for step in params['mp_steps']:
        eWa, eWb = step['eWa'], step['eWb']
        E0 = int(eWa.shape[1])
        eWab = jnp.concatenate([eWa, eWb], axis=1)          # (D, 2*E0): fused first edge layer
        flat += [eWab, step['eWd'], step['eb0']]
        max_w = max(max_w, E0)
        for W, b in step['edge_rest']:
            flat += [W, b]
            max_w = max(max_w, int(W.shape[1]))
        nWcat = jnp.concatenate([step['nWx'], step['nWagg']], axis=0)  # fused first node layer
        flat += [nWcat, step['nb0']]
        max_w = max(max_w, int(nWcat.shape[1]))
        for W, b in step['node_rest']:
            flat += [W, b]
            max_w = max(max_w, int(W.shape[1]))
        structure.append((E0, len(step['edge_rest']), len(step['node_rest'])))

    # lane-dense output: zero-pad the latent projection to a multiple of 128 lanes
    fW, fb = params['fW'], params['fb']
    L = fW.shape[1]
    Lpad = max(128, ((L + 127) // 128) * 128)
    fWp = jnp.zeros((fW.shape[0], Lpad), fW.dtype).at[:, :L].set(fW)
    fbp = jnp.zeros((1, Lpad), fb.dtype).at[:, :L].set(fb)
    flat += [fWp, fbp]

    # per-batch-element, per-MP-step f32 activation footprint (rough, for tile sizing)
    per_elem_bytes = 4 * (N * N * (2 * max_w + 4) + N * (4 * max_w + D))
    TB = _choose_tb(B, per_elem_bytes)

    kernel = functools.partial(
        _encoder_kernel,
        structure=tuple(structure),
        alphas=tuple(float(a) for a in alphas),
        compute_dtype=jnp.bfloat16 if use_bf16 else jnp.float32,
    )

    in_specs = [pl.BlockSpec((TB, N, D), lambda b: (b, 0, 0))]
    # all params are 2-D and grid-invariant (resident across the batch grid)
    in_specs += [pl.BlockSpec(p.shape, lambda b: (0, 0)) for p in flat]

    y = pl.pallas_call(
        kernel,
        out_shape=jax.ShapeDtypeStruct((B, 1, Lpad), x.dtype),
        grid=(B // TB,),
        in_specs=in_specs,
        out_specs=pl.BlockSpec((TB, 1, Lpad), lambda b: (b, 0, 0)),
        compiler_params=pltpu.CompilerParams(
            dimension_semantics=("parallel",),
            vmem_limit_bytes=64 * 1024 * 1024,   # v5e scoped default is only 16 MiB
        ),
    )(x, *flat)

    return y[:, 0, :L][None, :, :]                                 # (1, B, latent)


# ----------------------------------------------------------------------------
# Deterministic parameter init + pure-JAX reference
# ----------------------------------------------------------------------------
def init_params(key, input_node_size, latent_node_size, node_sizes, edge_sizes, num_mps):
    def dense(k, fin, fout, scale_fin=None):
        kw, kb = jax.random.split(k)
        s = jnp.sqrt(2.0 / (scale_fin if scale_fin is not None else fin))
        W = jax.random.normal(kw, (fin, fout), jnp.float32) * s
        b = jax.random.normal(kb, (1, fout), jnp.float32) * 0.01
        return W, b

    params = {'mp_steps': []}
    d = input_node_size
    for i in range(num_mps):
        key, *ks = jax.random.split(key, 8)
        e_sizes, n_sizes = edge_sizes[i], node_sizes[i]
        e_in = 2 * d + 1
        eWa, _ = dense(ks[0], d, e_sizes[0], scale_fin=e_in)
        eWb, _ = dense(ks[1], d, e_sizes[0], scale_fin=e_in)
        eWd, eb0 = dense(ks[2], 1, e_sizes[0], scale_fin=e_in)
        edge_rest, prev = [], e_sizes[0]
        key, *ek = jax.random.split(key, max(len(e_sizes), 2))
        for j, sz in enumerate(e_sizes[1:]):
            edge_rest.append(dense(ek[j], prev, sz)); prev = sz
        e_out = prev
        n_in = d + e_out
        nWx, _ = dense(ks[3], d, n_sizes[0], scale_fin=n_in)
        nWagg, nb0 = dense(ks[4], e_out, n_sizes[0], scale_fin=n_in)
        node_rest, prev = [], n_sizes[0]
        key, *nk = jax.random.split(key, max(len(n_sizes), 2))
        for j, sz in enumerate(n_sizes[1:]):
            node_rest.append(dense(nk[j], prev, sz)); prev = sz
        params['mp_steps'].append(dict(eWa=eWa, eWb=eWb, eWd=eWd, eb0=eb0,
                                       edge_rest=edge_rest, nWx=nWx, nWagg=nWagg,
                                       nb0=nb0, node_rest=node_rest))
        d = prev
    key, kf = jax.random.split(key)
    params['fW'], params['fb'] = dense(kf, d, latent_node_size)
    return params


def encoder_reference(params, x, alphas):
    hp = jax.lax.Precision.HIGHEST
    B, N, _ = x.shape
    h = x
    for i, sp in enumerate(params['mp_steps']):
        a = float(alphas[i])
        xi = jnp.repeat(h, N, axis=1)
        xj = jnp.tile(h, (1, N, 1))
        dist = jnp.sqrt(jnp.maximum(jnp.sum((xi - xj) ** 2, axis=-1, keepdims=True), 0.0))
        e = (jnp.dot(xi, sp['eWa'], precision=hp) + jnp.dot(xj, sp['eWb'], precision=hp)
             + dist * sp['eWd'] + sp['eb0'])
        e = jnp.where(e > 0, e, a * e)
        for W, b in sp['edge_rest']:
            e = jnp.dot(e, W, precision=hp) + b
            e = jnp.where(e > 0, e, a * e)
        agg = e.reshape(B, N, N, -1).sum(axis=2)
        g = (jnp.dot(h, sp['nWx'], precision=hp) + jnp.dot(agg, sp['nWagg'], precision=hp)
             + sp['nb0'])
        g = jnp.where(g > 0, g, a * g)
        for W, b in sp['node_rest']:
            g = jnp.dot(g, W, precision=hp) + b
            g = jnp.where(g > 0, g, a * g)
        h = g
    y = jnp.dot(h, params['fW'], precision=hp) + params['fb']
    return jnp.mean(y, axis=-2)[None]                 # (1, B, latent)


# ----------------------------------------------------------------------------
if __name__ == "__main__":
    B, N = 2, 8
    input_node_size = 4
    latent_node_size = 8
    node_sizes = [[32, 32], [32, 32]]
    edge_sizes = [[32, 16], [32, 16]]
    num_mps = 2
    alphas = [0.1, 0.12]

    params = init_params(jax.random.PRNGKey(1), input_node_size, latent_node_size,
                         node_sizes, edge_sizes, num_mps)
    x = jax.random.normal(jax.random.PRNGKey(0), (B, N, input_node_size), jnp.float32)

    out = encoder_forward(params, x, alphas=alphas, metric='cartesian', use_bf16=False)
    out = jax.block_until_ready(out)

    ref = encoder_reference(params, x, alphas)
    assert out.shape == (1, B, latent_node_size), out.shape
    np.testing.assert_allclose(np.asarray(out), np.asarray(ref), rtol=1e-2, atol=1e-3)

    print("KERNEL_OK")
</pallas_src>

<mosaic_0001>
module attributes {stable_mosaic.version = 11 : i64} {
  func.func @_encoder_kernel(%arg0: i32, %arg1: memref<1x8x4xf32, #tpu.memory_space<vmem>>, %arg2: memref<4x64xf32, #tpu.memory_space<vmem>>, %arg3: memref<1x32xf32, #tpu.memory_space<vmem>>, %arg4: memref<1x32xf32, #tpu.memory_space<vmem>>, %arg5: memref<32x16xf32, #tpu.memory_space<vmem>>, %arg6: memref<1x16xf32, #tpu.memory_space<vmem>>, %arg7: memref<20x32xf32, #tpu.memory_space<vmem>>, %arg8: memref<1x32xf32, #tpu.memory_space<vmem>>, %arg9: memref<32x32xf32, #tpu.memory_space<vmem>>, %arg10: memref<1x32xf32, #tpu.memory_space<vmem>>, %arg11: memref<32x64xf32, #tpu.memory_space<vmem>>, %arg12: memref<1x32xf32, #tpu.memory_space<vmem>>, %arg13: memref<1x32xf32, #tpu.memory_space<vmem>>, %arg14: memref<32x16xf32, #tpu.memory_space<vmem>>, %arg15: memref<1x16xf32, #tpu.memory_space<vmem>>, %arg16: memref<48x32xf32, #tpu.memory_space<vmem>>, %arg17: memref<1x32xf32, #tpu.memory_space<vmem>>, %arg18: memref<32x32xf32, #tpu.memory_space<vmem>>, %arg19: memref<1x32xf32, #tpu.memory_space<vmem>>, %arg20: memref<32x128xf32, #tpu.memory_space<vmem>>, %arg21: memref<1x128xf32, #tpu.memory_space<vmem>>, %arg22: memref<1x1x128xf32, #tpu.memory_space<vmem>>) attributes {dimension_semantics = [#tpu.dimension_semantics<parallel>], iteration_bounds = array<i64: 2>, scalar_prefetch = 0 : i64, scratch_operands = 0 : i64, tpu.core_type = #tpu.core_type<tc>, window_params = [{transform_indices = @transform_0, window_bounds = array<i64: 1, 8, 4>}, {pipeline_mode = #tpu.pipeline_mode<synchronous>, transform_indices = @transform_1, window_bounds = array<i64: 4, 64>}, {pipeline_mode = #tpu.pipeline_mode<synchronous>, transform_indices = @transform_2, window_bounds = array<i64: 1, 32>}, {pipeline_mode = #tpu.pipeline_mode<synchronous>, transform_indices = @transform_3, window_bounds = array<i64: 1, 32>}, {pipeline_mode = #tpu.pipeline_mode<synchronous>, transform_indices = @transform_4, window_bounds = array<i64: 32, 16>}, {pipeline_mode = #tpu.pipeline_mode<synchronous>, transform_indices = @transform_5, window_bounds = array<i64: 1, 16>}, {pipeline_mode = #tpu.pipeline_mode<synchronous>, transform_indices = @transform_6, window_bounds = array<i64: 20, 32>}, {pipeline_mode = #tpu.pipeline_mode<synchronous>, transform_indices = @transform_7, window_bounds = array<i64: 1, 32>}, {pipeline_mode = #tpu.pipeline_mode<synchronous>, transform_indices = @transform_8, window_bounds = array<i64: 32, 32>}, {pipeline_mode = #tpu.pipeline_mode<synchronous>, transform_indices = @transform_9, window_bounds = array<i64: 1, 32>}, {pipeline_mode = #tpu.pipeline_mode<synchronous>, transform_indices = @transform_10, window_bounds = array<i64: 32, 64>}, {pipeline_mode = #tpu.pipeline_mode<synchronous>, transform_indices = @transform_11, window_bounds = array<i64: 1, 32>}, {pipeline_mode = #tpu.pipeline_mode<synchronous>, transform_indices = @transform_12, window_bounds = array<i64: 1, 32>}, {pipeline_mode = #tpu.pipeline_mode<synchronous>, transform_indices = @transform_13, window_bounds = array<i64: 32, 16>}, {pipeline_mode = #tpu.pipeline_mode<synchronous>, transform_indices = @transform_14, window_bounds = array<i64: 1, 16>}, {pipeline_mode = #tpu.pipeline_mode<synchronous>, transform_indices = @transform_15, window_bounds = array<i64: 48, 32>}, {pipeline_mode = #tpu.pipeline_mode<synchronous>, transform_indices = @transform_16, window_bounds = array<i64: 1, 32>}, {pipeline_mode = #tpu.pipeline_mode<synchronous>, transform_indices = @transform_17, window_bounds = array<i64: 32, 32>}, {pipeline_mode = #tpu.pipeline_mode<synchronous>, transform_indices = @transform_18, window_bounds = array<i64: 1, 32>}, {pipeline_mode = #tpu.pipeline_mode<synchronous>, transform_indices = @transform_19, window_bounds = array<i64: 32, 128>}, {pipeline_mode = #tpu.pipeline_mode<synchronous>, transform_indices = @transform_20, window_bounds = array<i64: 1, 128>}, {transform_indices = @transform_21, window_bounds = array<i64: 1, 1, 128>}]} {
    %c0 = arith.constant 0 : index
    %c0_0 = arith.constant 0 : index
    %c0_1 = arith.constant 0 : index
    %0 = vector.load %arg1[%c0, %c0_0, %c0_1] : memref<1x8x4xf32, #tpu.memory_space<vmem>>, vector<1x8x4xf32>
    %c0_2 = arith.constant 0 : index
    %c0_3 = arith.constant 0 : index
    %1 = vector.load %arg2[%c0_2, %c0_3] : memref<4x64xf32, #tpu.memory_space<vmem>>, vector<4x64xf32>
    %c0_4 = arith.constant 0 : index
    %c0_5 = arith.constant 0 : index
    %2 = vector.load %arg3[%c0_4, %c0_5] : memref<1x32xf32, #tpu.memory_space<vmem>>, vector<1x32xf32>
    %c0_6 = arith.constant 0 : index
    %c0_7 = arith.constant 0 : index
    %3 = vector.load %arg4[%c0_6, %c0_7] : memref<1x32xf32, #tpu.memory_space<vmem>>, vector<1x32xf32>
    %c0_8 = arith.constant 0 : index
    %c0_9 = arith.constant 0 : index
    %4 = vector.load %arg5[%c0_8, %c0_9] : memref<32x16xf32, #tpu.memory_space<vmem>>, vector<32x16xf32>
    %c0_10 = arith.constant 0 : index
    %c0_11 = arith.constant 0 : index
    %5 = vector.load %arg6[%c0_10, %c0_11] : memref<1x16xf32, #tpu.memory_space<vmem>>, vector<1x16xf32>
    %c0_12 = arith.constant 0 : index
    %c0_13 = arith.constant 0 : index
    %6 = vector.load %arg7[%c0_12, %c0_13] : memref<20x32xf32, #tpu.memory_space<vmem>>, vector<20x32xf32>
    %c0_14 = arith.constant 0 : index
    %c0_15 = arith.constant 0 : index
    %7 = vector.load %arg8[%c0_14, %c0_15] : memref<1x32xf32, #tpu.memory_space<vmem>>, vector<1x32xf32>
    %c0_16 = arith.constant 0 : index
    %c0_17 = arith.constant 0 : index
    %8 = vector.load %arg9[%c0_16, %c0_17] : memref<32x32xf32, #tpu.memory_space<vmem>>, vector<32x32xf32>
    %c0_18 = arith.constant 0 : index
    %c0_19 = arith.constant 0 : index
    %9 = vector.load %arg10[%c0_18, %c0_19] : memref<1x32xf32, #tpu.memory_space<vmem>>, vector<1x32xf32>
    %10 = vector.shape_cast %0 : vector<1x8x4xf32> to vector<8x4xf32>
    %cst = arith.constant dense<0.000000e+00> : vector<1x8x8xf32>
    %11 = tpu.matmul %0, %0, %cst {dimension_numbers = #tpu.dot_dimension_numbers<[2], [2], [1], [1], [0, 0, 0, 1, 1, 1], [0], [0]>} : vector<1x8x4xf32>, vector<1x8x4xf32>, vector<1x8x8xf32> -> vector<1x8x8xf32>
    %12 = arith.mulf %0, %0 : vector<1x8x4xf32>
    %cst_20 = arith.constant dense<0.000000e+00> : vector<1x8xf32>
    %13 = vector.multi_reduction <add>, %12, %cst_20 [2] : vector<1x8x4xf32> to vector<1x8xf32>
    %14 = vector.shape_cast %13 : vector<1x8xf32> to vector<1x8x1xf32>
    %15 = vector.shape_cast %13 : vector<1x8xf32> to vector<1x1x8xf32>
    %16 = vector.broadcast %14 : vector<1x8x1xf32> to vector<1x8x8xf32>
    %17 = vector.broadcast %15 : vector<1x1x8xf32> to vector<1x8x8xf32>
    %18 = arith.addf %16, %17 : vector<1x8x8xf32>
    %cst_21 = arith.constant 2.000000e+00 : f32
    %19 = vector.broadcast %cst_21 : f32 to vector<1x8x8xf32>
    %20 = arith.mulf %19, %11 : vector<1x8x8xf32>
    %21 = arith.subf %18, %20 : vector<1x8x8xf32>
    %cst_22 = arith.constant 0.000000e+00 : f32
    %22 = vector.broadcast %cst_22 : f32 to vector<1x8x8xf32>
    %23 = arith.maximumf %21, %22 : vector<1x8x8xf32>
    %24 = math.sqrt %23 : vector<1x8x8xf32>
    %cst_23 = arith.constant dense<0.000000e+00> : vector<8x64xf32>
    %25 = tpu.matmul %10, %1, %cst_23 {dimension_numbers = #tpu.dot_dimension_numbers<[1], [0], [0], [1], [0, 0, 1, 1], [], []>} : vector<8x4xf32>, vector<4x64xf32>, vector<8x64xf32> -> vector<8x64xf32>
    %26 = vector.shape_cast %25 : vector<8x64xf32> to vector<1x8x64xf32>
    %27 = vector.extract_strided_slice %26 {offsets = [0, 0, 0], sizes = [1, 8, 32], strides = [1, 1, 1]} : vector<1x8x64xf32> to vector<1x8x32xf32>
    %28 = vector.extract_strided_slice %26 {offsets = [0, 0, 32], sizes = [1, 8, 32], strides = [1, 1, 1]} : vector<1x8x64xf32> to vector<1x8x32xf32>
    %29 = vector.shape_cast %27 : vector<1x8x32xf32> to vector<1x8x1x32xf32>
    %30 = vector.shape_cast %28 : vector<1x8x32xf32> to vector<1x1x8x32xf32>
    %31 = vector.broadcast %29 : vector<1x8x1x32xf32> to vector<1x8x8x32xf32>
    %32 = vector.broadcast %30 : vector<1x1x8x32xf32> to vector<1x8x8x32xf32>
    %33 = arith.addf %31, %32 : vector<1x8x8x32xf32>
    %34 = vector.shape_cast %24 : vector<1x8x8xf32> to vector<1x8x8x1xf32>
    %35 = vector.shape_cast %2 : vector<1x32xf32> to vector<1x1x1x32xf32>
    %36 = vector.broadcast %34 : vector<1x8x8x1xf32> to vector<1x8x8x32xf32>
    %37 = vector.broadcast %35 : vector<1x1x1x32xf32> to vector<1x8x8x32xf32>
    %38 = arith.mulf %36, %37 : vector<1x8x8x32xf32>
    %39 = arith.addf %33, %38 : vector<1x8x8x32xf32>
    %40 = vector.shape_cast %3 : vector<1x32xf32> to vector<1x1x1x32xf32>
    %41 = vector.broadcast %40 : vector<1x1x1x32xf32> to vector<1x8x8x32xf32>
    %42 = arith.addf %39, %41 : vector<1x8x8x32xf32>
    %cst_24 = arith.constant 1.000000e-01 : f32
    %43 = vector.broadcast %cst_24 : f32 to vector<1x8x8x32xf32>
    %44 = arith.mulf %43, %42 : vector<1x8x8x32xf32>
    %45 = arith.maximumf %42, %44 : vector<1x8x8x32xf32>
    %46 = vector.shape_cast %45 : vector<1x8x8x32xf32> to vector<64x32xf32>
    %cst_25 = arith.constant dense<0.000000e+00> : vector<64x16xf32>
    %47 = tpu.matmul %46, %4, %cst_25 {dimension_numbers = #tpu.dot_dimension_numbers<[1], [0], [0], [1], [0, 0, 1, 1], [], []>} : vector<64x32xf32>, vector<32x16xf32>, vector<64x16xf32> -> vector<64x16xf32>
    %48 = vector.broadcast %5 : vector<1x16xf32> to vector<64x16xf32>
    %49 = arith.addf %47, %48 : vector<64x16xf32>
    %cst_26 = arith.constant 1.000000e-01 : f32
    %50 = vector.broadcast %cst_26 : f32 to vector<64x16xf32>
    %51 = arith.mulf %50, %49 : vector<64x16xf32>
    %52 = arith.maximumf %49, %51 : vector<64x16xf32>
    %53 = vector.shape_cast %52 : vector<64x16xf32> to vector<1x8x8x16xf32>
    %cst_27 = arith.constant dense<0.000000e+00> : vector<1x8x16xf32>
    %54 = vector.multi_reduction <add>, %53, %cst_27 [2] : vector<1x8x8x16xf32> to vector<1x8x16xf32>
    %55 = vector.shape_cast %54 : vector<1x8x16xf32> to vector<8x16xf32>
    %56 = tpu.concatenate %10, %55 in 1 : vector<8x4xf32>, vector<8x16xf32> -> vector<8x20xf32>
    %cst_28 = arith.constant dense<0.000000e+00> : vector<8x32xf32>
    %57 = tpu.matmul %56, %6, %cst_28 {dimension_numbers = #tpu.dot_dimension_numbers<[1], [0], [0], [1], [0, 0, 1, 1], [], []>} : vector<8x20xf32>, vector<20x32xf32>, vector<8x32xf32> -> vector<8x32xf32>
    %58 = vector.broadcast %7 : vector<1x32xf32> to vector<8x32xf32>
    %59 = arith.addf %57, %58 : vector<8x32xf32>
    %cst_29 = arith.constant 1.000000e-01 : f32
    %60 = vector.broadcast %cst_29 : f32 to vector<8x32xf32>
    %61 = arith.mulf %60, %59 : vector<8x32xf32>
    %62 = arith.maximumf %59, %61 : vector<8x32xf32>
    %cst_30 = arith.constant dense<0.000000e+00> : vector<8x32xf32>
    %63 = tpu.matmul %62, %8, %cst_30 {dimension_numbers = #tpu.dot_dimension_numbers<[1], [0], [0], [1], [0, 0, 1, 1], [], []>} : vector<8x32xf32>, vector<32x32xf32>, vector<8x32xf32> -> vector<8x32xf32>
    %64 = vector.broadcast %9 : vector<1x32xf32> to vector<8x32xf32>
    %65 = arith.addf %63, %64 : vector<8x32xf32>
    %cst_31 = arith.constant 1.000000e-01 : f32
    %66 = vector.broadcast %cst_31 : f32 to vector<8x32xf32>
    %67 = arith.mulf %66, %65 : vector<8x32xf32>
    %68 = arith.maximumf %65, %67 : vector<8x32xf32>
    %69 = vector.shape_cast %68 : vector<8x32xf32> to vector<1x8x32xf32>
    %c0_32 = arith.constant 0 : index
    %c0_33 = arith.constant 0 : index
    %70 = vector.load %arg11[%c0_32, %c0_33] : memref<32x64xf32, #tpu.memory_space<vmem>>, vector<32x64xf32>
    %c0_34 = arith.constant 0 : index
    %c0_35 = arith.constant 0 : index
    %71 = vector.load %arg12[%c0_34, %c0_35] : memref<1x32xf32, #tpu.memory_space<vmem>>, vector<1x32xf32>
    %c0_36 = arith.constant 0 : index
    %c0_37 = arith.constant 0 : index
    %72 = vector.load %arg13[%c0_36, %c0_37] : memref<1x32xf32, #tpu.memory_space<vmem>>, vector<1x32xf32>
    %c0_38 = arith.constant 0 : index
    %c0_39 = arith.constant 0 : index
    %73 = vector.load %arg14[%c0_38, %c0_39] : memref<32x16xf32, #tpu.memory_space<vmem>>, vector<32x16xf32>
    %c0_40 = arith.constant 0 : index
    %c0_41 = arith.constant 0 : index
    %74 = vector.load %arg15[%c0_40, %c0_41] : memref<1x16xf32, #tpu.memory_space<vmem>>, vector<1x16xf32>
    %c0_42 = arith.constant 0 : index
    %c0_43 = arith.constant 0 : index
    %75 = vector.load %arg16[%c0_42, %c0_43] : memref<48x32xf32, #tpu.memory_space<vmem>>, vector<48x32xf32>
    %c0_44 = arith.constant 0 : index
    %c0_45 = arith.constant 0 : index
    %76 = vector.load %arg17[%c0_44, %c0_45] : memref<1x32xf32, #tpu.memory_space<vmem>>, vector<1x32xf32>
    %c0_46 = arith.constant 0 : index
    %c0_47 = arith.constant 0 : index
    %77 = vector.load %arg18[%c0_46, %c0_47] : memref<32x32xf32, #tpu.memory_space<vmem>>, vector<32x32xf32>
    %c0_48 = arith.constant 0 : index
    %c0_49 = arith.constant 0 : index
    %78 = vector.load %arg19[%c0_48, %c0_49] : memref<1x32xf32, #tpu.memory_space<vmem>>, vector<1x32xf32>
    %79 = vector.shape_cast %69 : vector<1x8x32xf32> to vector<8x32xf32>
    %cst_50 = arith.constant dense<0.000000e+00> : vector<1x8x8xf32>
    %80 = tpu.matmul %69, %69, %cst_50 {dimension_numbers = #tpu.dot_dimension_numbers<[2], [2], [1], [1], [0, 0, 0, 1, 1, 1], [0], [0]>} : vector<1x8x32xf32>, vector<1x8x32xf32>, vector<1x8x8xf32> -> vector<1x8x8xf32>
    %81 = arith.mulf %69, %69 : vector<1x8x32xf32>
    %cst_51 = arith.constant dense<0.000000e+00> : vector<1x8xf32>
    %82 = vector.multi_reduction <add>, %81, %cst_51 [2] : vector<1x8x32xf32> to vector<1x8xf32>
    %83 = vector.shape_cast %82 : vector<1x8xf32> to vector<1x8x1xf32>
    %84 = vector.shape_cast %82 : vector<1x8xf32> to vector<1x1x8xf32>
    %85 = vector.broadcast %83 : vector<1x8x1xf32> to vector<1x8x8xf32>
    %86 = vector.broadcast %84 : vector<1x1x8xf32> to vector<1x8x8xf32>
    %87 = arith.addf %85, %86 : vector<1x8x8xf32>
    %cst_52 = arith.constant 2.000000e+00 : f32
    %88 = vector.broadcast %cst_52 : f32 to vector<1x8x8xf32>
    %89 = arith.mulf %88, %80 : vector<1x8x8xf32>
    %90 = arith.subf %87, %89 : vector<1x8x8xf32>
    %cst_53 = arith.constant 0.000000e+00 : f32
    %91 = vector.broadcast %cst_53 : f32 to vector<1x8x8xf32>
    %92 = arith.maximumf %90, %91 : vector<1x8x8xf32>
    %93 = math.sqrt %92 : vector<1x8x8xf32>
    %cst_54 = arith.constant dense<0.000000e+00> : vector<8x64xf32>
    %94 = tpu.matmul %79, %70, %cst_54 {dimension_numbers = #tpu.dot_dimension_numbers<[1], [0], [0], [1], [0, 0, 1, 1], [], []>} : vector<8x32xf32>, vector<32x64xf32>, vector<8x64xf32> -> vector<8x64xf32>
    %95 = vector.shape_cast %94 : vector<8x64xf32> to vector<1x8x64xf32>
    %96 = vector.extract_strided_slice %95 {offsets = [0, 0, 0], sizes = [1, 8, 32], strides = [1, 1, 1]} : vector<1x8x64xf32> to vector<1x8x32xf32>
    %97 = vector.extract_strided_slice %95 {offsets = [0, 0, 32], sizes = [1, 8, 32], strides = [1, 1, 1]} : vector<1x8x64xf32> to vector<1x8x32xf32>
    %98 = vector.shape_cast %96 : vector<1x8x32xf32> to vector<1x8x1x32xf32>
    %99 = vector.shape_cast %97 : vector<1x8x32xf32> to vector<1x1x8x32xf32>
    %100 = vector.broadcast %98 : vector<1x8x1x32xf32> to vector<1x8x8x32xf32>
    %101 = vector.broadcast %99 : vector<1x1x8x32xf32> to vector<1x8x8x32xf32>
    %102 = arith.addf %100, %101 : vector<1x8x8x32xf32>
    %103 = vector.shape_cast %93 : vector<1x8x8xf32> to vector<1x8x8x1xf32>
    %104 = vector.shape_cast %71 : vector<1x32xf32> to vector<1x1x1x32xf32>
    %105 = vector.broadcast %103 : vector<1x8x8x1xf32> to vector<1x8x8x32xf32>
    %106 = vector.broadcast %104 : vector<1x1x1x32xf32> to vector<1x8x8x32xf32>
    %107 = arith.mulf %105, %106 : vector<1x8x8x32xf32>
    %108 = arith.addf %102, %107 : vector<1x8x8x32xf32>
    %109 = vector.shape_cast %72 : vector<1x32xf32> to vector<1x1x1x32xf32>
    %110 = vector.broadcast %109 : vector<1x1x1x32xf32> to vector<1x8x8x32xf32>
    %111 = arith.addf %108, %110 : vector<1x8x8x32xf32>
    %cst_55 = arith.constant 1.200000e-01 : f32
    %112 = vector.broadcast %cst_55 : f32 to vector<1x8x8x32xf32>
    %113 = arith.mulf %112, %111 : vector<1x8x8x32xf32>
    %114 = arith.maximumf %111, %113 : vector<1x8x8x32xf32>
    %115 = vector.shape_cast %114 : vector<1x8x8x32xf32> to vector<64x32xf32>
    %cst_56 = arith.constant dense<0.000000e+00> : vector<64x16xf32>
    %116 = tpu.matmul %115, %73, %cst_56 {dimension_numbers = #tpu.dot_dimension_numbers<[1], [0], [0], [1], [0, 0, 1, 1], [], []>} : vector<64x32xf32>, vector<32x16xf32>, vector<64x16xf32> -> vector<64x16xf32>
    %117 = vector.broadcast %74 : vector<1x16xf32> to vector<64x16xf32>
    %118 = arith.addf %116, %117 : vector<64x16xf32>
    %cst_57 = arith.constant 1.200000e-01 : f32
    %119 = vector.broadcast %cst_57 : f32 to vector<64x16xf32>
    %120 = arith.mulf %119, %118 : vector<64x16xf32>
    %121 = arith.maximumf %118, %120 : vector<64x16xf32>
    %122 = vector.shape_cast %121 : vector<64x16xf32> to vector<1x8x8x16xf32>
    %cst_58 = arith.constant dense<0.000000e+00> : vector<1x8x16xf32>
    %123 = vector.multi_reduction <add>, %122, %cst_58 [2] : vector<1x8x8x16xf32> to vector<1x8x16xf32>
    %124 = vector.shape_cast %123 : vector<1x8x16xf32> to vector<8x16xf32>
    %125 = tpu.concatenate %79, %124 in 1 : vector<8x32xf32>, vector<8x16xf32> -> vector<8x48xf32>
    %cst_59 = arith.constant dense<0.000000e+00> : vector<8x32xf32>
    %126 = tpu.matmul %125, %75, %cst_59 {dimension_numbers = #tpu.dot_dimension_numbers<[1], [0], [0], [1], [0, 0, 1, 1], [], []>} : vector<8x48xf32>, vector<48x32xf32>, vector<8x32xf32> -> vector<8x32xf32>
    %127 = vector.broadcast %76 : vector<1x32xf32> to vector<8x32xf32>
    %128 = arith.addf %126, %127 : vector<8x32xf32>
    %cst_60 = arith.constant 1.200000e-01 : f32
    %129 = vector.broadcast %cst_60 : f32 to vector<8x32xf32>
    %130 = arith.mulf %129, %128 : vector<8x32xf32>
    %131 = arith.maximumf %128, %130 : vector<8x32xf32>
    %cst_61 = arith.constant dense<0.000000e+00> : vector<8x32xf32>
    %132 = tpu.matmul %131, %77, %cst_61 {dimension_numbers = #tpu.dot_dimension_numbers<[1], [0], [0], [1], [0, 0, 1, 1], [], []>} : vector<8x32xf32>, vector<32x32xf32>, vector<8x32xf32> -> vector<8x32xf32>
    %133 = vector.broadcast %78 : vector<1x32xf32> to vector<8x32xf32>
    %134 = arith.addf %132, %133 : vector<8x32xf32>
    %cst_62 = arith.constant 1.200000e-01 : f32
    %135 = vector.broadcast %cst_62 : f32 to vector<8x32xf32>
    %136 = arith.mulf %135, %134 : vector<8x32xf32>
    %137 = arith.maximumf %134, %136 : vector<8x32xf32>
    %138 = vector.shape_cast %137 : vector<8x32xf32> to vector<1x8x32xf32>
    %c0_63 = arith.constant 0 : index
    %c0_64 = arith.constant 0 : index
    %139 = vector.load %arg20[%c0_63, %c0_64] : memref<32x128xf32, #tpu.memory_space<vmem>>, vector<32x128xf32>
    %c0_65 = arith.constant 0 : index
    %c0_66 = arith.constant 0 : index
    %140 = vector.load %arg21[%c0_65, %c0_66] : memref<1x128xf32, #tpu.memory_space<vmem>>, vector<1x128xf32>
    %cst_67 = arith.constant dense<0.000000e+00> : vector<1x32xf32>
    %141 = vector.multi_reduction <add>, %138, %cst_67 [1] : vector<1x8x32xf32> to vector<1x32xf32>
    %cst_68 = arith.constant 1.250000e-01 : f32
    %142 = vector.broadcast %cst_68 : f32 to vector<1x32xf32>
    %143 = arith.mulf %141, %142 : vector<1x32xf32>
    %cst_69 = arith.constant dense<0.000000e+00> : vector<1x128xf32>
    %144 = tpu.matmul %143, %139, %cst_69 {dimension_numbers = #tpu.dot_dimension_numbers<[1], [0], [0], [1], [0, 0, 1, 1], [], []>} : vector<1x32xf32>, vector<32x128xf32>, vector<1x128xf32> -> vector<1x128xf32>
    %145 = arith.addf %144, %140 : vector<1x128xf32>
    %146 = vector.shape_cast %145 : vector<1x128xf32> to vector<1x1x128xf32>
    %c0_70 = arith.constant 0 : index
    %c0_71 = arith.constant 0 : index
    %c0_72 = arith.constant 0 : index
    %147 = vector.load %arg22[%c0_70, %c0_71, %c0_72] : memref<1x1x128xf32, #tpu.memory_space<vmem>>, vector<1x1x128xf32>
    tpu.vector_store %arg22[%c0_70, %c0_71, %c0_72], %146 {strides = array<i32>} : memref<1x1x128xf32, #tpu.memory_space<vmem>>, vector<1x1x128xf32>,
    return
  }
  func.func @transform_0(%arg0: i32) -> (i32, i32, i32) {
    %c0_i32 = arith.constant 0 : i32
    %c0_i32_0 = arith.constant 0 : i32
    %c0_i32_1 = arith.constant 0 : i32
    return %arg0, %c0_i32, %c0_i32_0 : i32, i32, i32
  }
  func.func @transform_1(%arg0: i32) -> (i32, i32) {
    %c0_i32 = arith.constant 0 : i32
    %c0_i32_0 = arith.constant 0 : i32
    %c0_i32_1 = arith.constant 0 : i32
    return %c0_i32, %c0_i32_0 : i32, i32
  }
  func.func @transform_2(%arg0: i32) -> (i32, i32) {
    %c0_i32 = arith.constant 0 : i32
    %c0_i32_0 = arith.constant 0 : i32
    %c0_i32_1 = arith.constant 0 : i32
    return %c0_i32, %c0_i32_0 : i32, i32
  }
  func.func @transform_3(%arg0: i32) -> (i32, i32) {
    %c0_i32 = arith.constant 0 : i32
    %c0_i32_0 = arith.constant 0 : i32
    %c0_i32_1 = arith.constant 0 : i32
    return %c0_i32, %c0_i32_0 : i32, i32
  }
  func.func @transform_4(%arg0: i32) -> (i32, i32) {
    %c0_i32 = arith.constant 0 : i32
    %c0_i32_0 = arith.constant 0 : i32
    %c0_i32_1 = arith.constant 0 : i32
    return %c0_i32, %c0_i32_0 : i32, i32
  }
  func.func @transform_5(%arg0: i32) -> (i32, i32) {
    %c0_i32 = arith.constant 0 : i32
    %c0_i32_0 = arith.constant 0 : i32
    %c0_i32_1 = arith.constant 0 : i32
    return %c0_i32, %c0_i32_0 : i32, i32
  }
  func.func @transform_6(%arg0: i32) -> (i32, i32) {
    %c0_i32 = arith.constant 0 : i32
    %c0_i32_0 = arith.constant 0 : i32
    %c0_i32_1 = arith.constant 0 : i32
    return %c0_i32, %c0_i32_0 : i32, i32
  }
  func.func @transform_7(%arg0: i32) -> (i32, i32) {
    %c0_i32 = arith.constant 0 : i32
    %c0_i32_0 = arith.constant 0 : i32
    %c0_i32_1 = arith.constant 0 : i32
    return %c0_i32, %c0_i32_0 : i32, i32
  }
  func.func @transform_8(%arg0: i32) -> (i32, i32) {
    %c0_i32 = arith.constant 0 : i32
    %c0_i32_0 = arith.constant 0 : i32
    %c0_i32_1 = arith.constant 0 : i32
    return %c0_i32, %c0_i32_0 : i32, i32
  }
  func.func @transform_9(%arg0: i32) -> (i32, i32) {
    %c0_i32 = arith.constant 0 : i32
    %c0_i32_0 = arith.constant 0 : i32
    %c0_i32_1 = arith.constant 0 : i32
    return %c0_i32, %c0_i32_0 : i32, i32
  }
  func.func @transform_10(%arg0: i32) -> (i32, i32) {
    %c0_i32 = arith.constant 0 : i32
    %c0_i32_0 = arith.constant 0 : i32
    %c0_i32_1 = arith.constant 0 : i32
    return %c0_i32, %c0_i32_0 : i32, i32
  }
  func.func @transform_11(%arg0: i32) -> (i32, i32) {
    %c0_i32 = arith.constant 0 : i32
    %c0_i32_0 = arith.constant 0 : i32
    %c0_i32_1 = arith.constant 0 : i32
    return %c0_i32, %c0_i32_0 : i32, i32
  }
  func.func @transform_12(%arg0: i32) -> (i32, i32) {
    %c0_i32 = arith.constant 0 : i32
    %c0_i32_0 = arith.constant 0 : i32
    %c0_i32_1 = arith.constant 0 : i32
    return %c0_i32, %c0_i32_0 : i32, i32
  }
  func.func @transform_13(%arg0: i32) -> (i32, i32) {
    %c0_i32 = arith.constant 0 : i32
    %c0_i32_0 = arith.constant 0 : i32
    %c0_i32_1 = arith.constant 0 : i32
    return %c0_i32, %c0_i32_0 : i32, i32
  }
  func.func @transform_14(%arg0: i32) -> (i32, i32) {
    %c0_i32 = arith.constant 0 : i32
    %c0_i32_0 = arith.constant 0 : i32
    %c0_i32_1 = arith.constant 0 : i32
    return %c0_i32, %c0_i32_0 : i32, i32
  }
  func.func @transform_15(%arg0: i32) -> (i32, i32) {
    %c0_i32 = arith.constant 0 : i32
    %c0_i32_0 = arith.constant 0 : i32
    %c0_i32_1 = arith.constant 0 : i32
    return %c0_i32, %c0_i32_0 : i32, i32
  }
  func.func @transform_16(%arg0: i32) -> (i32, i32) {
    %c0_i32 = arith.constant 0 : i32
    %c0_i32_0 = arith.constant 0 : i32
    %c0_i32_1 = arith.constant 0 : i32
    return %c0_i32, %c0_i32_0 : i32, i32
  }
  func.func @transform_17(%arg0: i32) -> (i32, i32) {
    %c0_i32 = arith.constant 0 : i32
    %c0_i32_0 = arith.constant 0 : i32
    %c0_i32_1 = arith.constant 0 : i32
    return %c0_i32, %c0_i32_0 : i32, i32
  }
  func.func @transform_18(%arg0: i32) -> (i32, i32) {
    %c0_i32 = arith.constant 0 : i32
    %c0_i32_0 = arith.constant 0 : i32
    %c0_i32_1 = arith.constant 0 : i32
    return %c0_i32, %c0_i32_0 : i32, i32
  }
  func.func @transform_19(%arg0: i32) -> (i32, i32) {
    %c0_i32 = arith.constant 0 : i32
    %c0_i32_0 = arith.constant 0 : i32
    %c0_i32_1 = arith.constant 0 : i32
    return %c0_i32, %c0_i32_0 : i32, i32
  }
  func.func @transform_20(%arg0: i32) -> (i32, i32) {
    %c0_i32 = arith.constant 0 : i32
    %c0_i32_0 = arith.constant 0 : i32
    %c0_i32_1 = arith.constant 0 : i32
    return %c0_i32, %c0_i32_0 : i32, i32
  }
  func.func @transform_21(%arg0: i32) -> (i32, i32, i32) {
    %c0_i32 = arith.constant 0 : i32
    %c0_i32_0 = arith.constant 0 : i32
    %c0_i32_1 = arith.constant 0 : i32
    return %arg0, %c0_i32, %c0_i32_0 : i32, i32, i32
  }
}

</mosaic_0001>

<llo_original>
// kernel: tpu_custom_call.1
$region0: #{tpu_custom_call.1}
  #allocation0 [shape = 'u32[]', space=smem, size = 0x4, offset = 0x4, fixed_abs, tag = 'smem constant byte address 0x4 - core index']
  #allocation1 [shape = 'u32[144,128]{1,0:T(1,128)}', space=vmem, size = 0x12000, scoped, tag = 'internal scratch']
  %s0 = inlined_call_operand.vmem [shape: f32[2,8,4], index: 0, kind: input, shape index: {}]
  %s1 = inlined_call_operand.hbm [shape: f32[4,64], index: 1, kind: input, shape index: {}]
  %s2 = inlined_call_operand.hbm [shape: f32[1,32], index: 2, kind: input, shape index: {}]
  %s3 = inlined_call_operand.hbm [shape: f32[1,32], index: 3, kind: input, shape index: {}]
  %s4 = inlined_call_operand.vmem [shape: f32[32,16], index: 4, kind: input, shape index: {}]
  %s5 = inlined_call_operand.hbm [shape: f32[1,16], index: 5, kind: input, shape index: {}]
  %s6 = inlined_call_operand.vmem [shape: f32[20,32], index: 6, kind: input, shape index: {}]
  %s7 = inlined_call_operand.hbm [shape: f32[1,32], index: 7, kind: input, shape index: {}]
  %s8 = inlined_call_operand.vmem [shape: f32[32,32], index: 8, kind: input, shape index: {}]
  %s9 = inlined_call_operand.hbm [shape: f32[1,32], index: 9, kind: input, shape index: {}]
  %s10 = inlined_call_operand.vmem [shape: f32[32,64], index: 10, kind: input, shape index: {}]
  %s11 = inlined_call_operand.vmem [shape: f32[1,32], index: 11, kind: input, shape index: {}]
  %s12 = inlined_call_operand.vmem [shape: f32[1,32], index: 12, kind: input, shape index: {}]
  %s13 = inlined_call_operand.vmem [shape: f32[32,16], index: 13, kind: input, shape index: {}]
  %s14 = inlined_call_operand.vmem [shape: f32[1,16], index: 14, kind: input, shape index: {}]
  %s15 = inlined_call_operand.vmem [shape: f32[48,32], index: 15, kind: input, shape index: {}]
  %s16 = inlined_call_operand.vmem [shape: f32[1,32], index: 16, kind: input, shape index: {}]
  %s17 = inlined_call_operand.vmem [shape: f32[32,32], index: 17, kind: input, shape index: {}]
  %s18 = inlined_call_operand.vmem [shape: f32[1,32], index: 18, kind: input, shape index: {}]
  %s19 = inlined_call_operand.vmem [shape: f32[32,128], index: 19, kind: input, shape index: {}]
  %s20 = inlined_call_operand.vmem [shape: f32[1,128], index: 20, kind: input, shape index: {}]
  %s21 = inlined_call_operand.hbm [shape: f32[2,1,128], index: 21, kind: output, shape index: {}]
  %s22 = sld [smem:[#allocation0]]
  $region141: #{tpu_custom_call.1} parent=0
    _
  %s24 = ssub.s32 1, %s22
  %s25 = scalar_select 0, %s24, %s22
  $region1: #{tpu_custom_call.1} parent=0
    #allocation2 [shape = 'u8[2048]{0}', space=vmem, size = 0x800, scoped, tag = 'input window, operand 1, single buffered']
    #allocation3 [shape = 's32[2]{0}', space=sflag, size = 0x8, scoped, tag = 'scoped memory for tpu_custom_call.1']
    #allocation4 [shape = 's32[2]{0}', space=sflag, size = 0x8, scoped, tag = 'scoped memory for tpu_custom_call.1']
    #allocation5 [shape = 'u8[512]{0}', space=vmem, size = 0x400, scoped, tag = 'input window, operand 2, single buffered']
    #allocation6 [shape = 's32[1]{0}', space=sflag, size = 0x4, scoped, tag = 'scoped memory for tpu_custom_call.1']
    #allocation7 [shape = 'u8[512]{0}', space=vmem, size = 0x400, scoped, tag = 'input window, operand 3, single buffered']
    #allocation8 [shape = 'u8[512]{0}', space=vmem, size = 0x400, scoped, tag = 'input window, operand 5, single buffered']
    #allocation9 [shape = 's32[1]{0}', space=sflag, size = 0x4, scoped, tag = 'scoped memory for tpu_custom_call.1']
    #allocation10 [shape = 'u8[512]{0}', space=vmem, size = 0x400, scoped, tag = 'input window, operand 7, single buffered']
    #allocation11 [shape = 'u8[512]{0}', space=vmem, size = 0x400, scoped, tag = 'input window, operand 9, single buffered']
    #allocation12 [shape = 's32[1]{0}', space=sflag, size = 0x4, scoped, tag = 'scoped memory for tpu_custom_call.1']
    #allocation13 [shape = 'u8[1024]{0}', space=vmem, size = 0x400, scoped, tag = 'output window, operand 0']
    %26 = vsyncpa [#allocation3], 0
    %27 = vsyncpa [#allocation6], 0
    %28 = vsyncpa [#allocation9], 0
    %29 = vsyncpa [#allocation12], 0
    %30 = vsyncpa [#allocation4], 0
    %s31 = scalar_lea.sflag [#allocation4], 1
    %32 = vsyncpa %s31, 0
    loop: start=0, step=1, limit=4
    $region2: #{tpu_custom_call.1} parent=1 // loop_pre_header
      _
    $region3: #{tpu_custom_call.1} parent=1 // loop_header
      %s34 = sphi 0, %s38
      %p35 = scmp.ge.s32.totalorder %s34, 4
      %s44 = sphi 0, %s46
      %s47 = sphi 0, %s44
      %s48 = sphi 0, %s47
      %s64 = sphi 0, %s48
      %s68 = sphi 0, %s68
      %s70 = sphi 0, %s68
      %s71 = sphi 0, %s70
      %s85 = sphi 0, %s71
      %s89 = sphi 0, %s89
      %s91 = sphi 0, %s89
      %s92 = sphi 0, %s91
      %s106 = sphi 0, %s92
      %s110 = sphi 0, %s110
      %s112 = sphi 0, %s110
      %s113 = sphi 0, %s112
      %s127 = sphi 0, %s113
      %s131 = sphi 0, %s131
      %s133 = sphi 0, %s131
      %s134 = sphi 0, %s133
      %s148 = sphi 0, %s134
      %s152 = sphi 0, %s152
      %s154 = sphi 0, %s152
      %s155 = sphi 0, %s154
      %s169 = sphi 0, %s155
      %s173 = sphi 0, %s173
      %s175 = sphi 0, %s173
      %s176 = sphi 0, %s175
      %s190 = sphi 0, %s176
      %s194 = sphi 0, %s194
      %s196 = sphi 0, %s194
      %s197 = sphi 0, %s196
      %s211 = sphi 0, %s197
      %s215 = sphi 0, %s215
      %s217 = sphi 0, %s215
      %s218 = sphi 0, %s217
      %s232 = sphi 0, %s218
      %s236 = sphi 0, %s236
      %s238 = sphi 0, %s236
      %s239 = sphi 0, %s238
      %s253 = sphi 0, %s239
      %s257 = sphi 0, %s257
      %s259 = sphi 0, %s257
      %s260 = sphi 0, %s259
      %s274 = sphi 0, %s260
      %s278 = sphi 0, %s278
      %s280 = sphi 0, %s278
      %s281 = sphi 0, %s280
      %s295 = sphi 0, %s281
      %s299 = sphi 0, %s299
      %s301 = sphi 0, %s299
      %s302 = sphi 0, %s301
      %s316 = sphi 0, %s302
      %s320 = sphi 0, %s320
      %s322 = sphi 0, %s320
      %s323 = sphi 0, %s322
      %s337 = sphi 0, %s323
      %s341 = sphi 0, %s341
      %s343 = sphi 0, %s341
      %s344 = sphi 0, %s343
      %s358 = sphi 0, %s344
      %s362 = sphi 0, %s362
      %s364 = sphi 0, %s362
      %s365 = sphi 0, %s364
      %s379 = sphi 0, %s365
      %s383 = sphi 0, %s383
      %s385 = sphi 0, %s383
      %s386 = sphi 0, %s385
      %s400 = sphi 0, %s386
      %s404 = sphi 0, %s404
      %s406 = sphi 0, %s404
      %s407 = sphi 0, %s406
      %s421 = sphi 0, %s407
      %s425 = sphi 0, %s425
      %s427 = sphi 0, %s425
      %s428 = sphi 0, %s427
      %s442 = sphi 0, %s428
      %s446 = sphi 0, %s446
      %s448 = sphi 0, %s446
      %s449 = sphi 0, %s448
      %s463 = sphi 0, %s449
      %s467 = sphi 0, %s467
      %s469 = sphi 0, %s467
      %s470 = sphi 0, %s469
      %s484 = sphi 0, %s470
      %s490 = sphi 0, %s492
      %s493 = sphi 0, %s490
      %s494 = sphi 0, %s493
      %s510 = sphi 0, %s494
    $region4: #{tpu_custom_call.1} parent=1 // loop_header_branch
      %37 = sbr.rel (%p35) target = $region8
    $region5: #{tpu_custom_call.1} parent=1 // loop_body
      %s39 = ssub.s32 %s34, 1
      %s40 = ssub.s32 %s34, 2
      %s41 = sadd.s32 %s34, 1
      %s42 = ssub.s32 %s34, %s41
      %p43 = scmp.eq.s32.totalorder %s42, 0
      %s45 = sadd.s32 %s44, 1
      %s46 = scalar_select %p43, %s44, %s45
      %p49 = pneg %p43
      %p50 = scmp.eq.s32.totalorder %s34, 1
      %p51 = por %p49, %p50
      %p52 = scmp.ne.s32.totalorder %s44, %s47
      %p53 = scmp.eq.s32.totalorder %s34, 0
      %p54 = por %p52, %p53
      %p55 = scmp.ne.s32.totalorder %s44, %s47
      %p56 = scmp.eq.s32.totalorder %s39, 1
      %p57 = por %p55, %p56
      %p58 = scmp.ne.s32.totalorder %s47, %s48
      %p59 = scmp.eq.s32.totalorder %s39, 0
      %p60 = por %p58, %p59
      %p61 = scmp.ne.s32.totalorder %s47, %s48
      %p62 = scmp.eq.s32.totalorder %s40, 1
      %p63 = por %p61, %p62
      %p65 = scmp.ne.s32.totalorder %s48, %s64
      %p66 = scmp.eq.s32.totalorder %s40, 0
      %p67 = por %p65, %p66
      %s69 = sadd.s32 %s68, 1
      %p72 = scmp.eq.s32.totalorder %s34, 1
      %p73 = scmp.ne.s32.totalorder %s68, %s70
      %p74 = scmp.eq.s32.totalorder %s34, 0
      %p75 = por %p73, %p74
      %p76 = scmp.ne.s32.totalorder %s68, %s70
      %p77 = scmp.eq.s32.totalorder %s39, 1
      %p78 = por %p76, %p77
      %p79 = scmp.ne.s32.totalorder %s70, %s71
      %p80 = scmp.eq.s32.totalorder %s39, 0
      %p81 = por %p79, %p80
      %p82 = scmp.ne.s32.totalorder %s70, %s71
      %p83 = scmp.eq.s32.totalorder %s40, 1
      %p84 = por %p82, %p83
      %p86 = scmp.ne.s32.totalorder %s71, %s85
      %p87 = scmp.eq.s32.totalorder %s40, 0
      %p88 = por %p86, %p87
      %s90 = sadd.s32 %s89, 1
      %p93 = scmp.eq.s32.totalorder %s34, 1
      %p94 = scmp.ne.s32.totalorder %s89, %s91
      %p95 = scmp.eq.s32.totalorder %s34, 0
      %p96 = por %p94, %p95
      %p97 = scmp.ne.s32.totalorder %s89, %s91
      %p98 = scmp.eq.s32.totalorder %s39, 1
      %p99 = por %p97, %p98
      %p100 = scmp.ne.s32.totalorder %s91, %s92
      %p101 = scmp.eq.s32.totalorder %s39, 0
      %p102 = por %p100, %p101
      %p103 = scmp.ne.s32.totalorder %s91, %s92
      %p104 = scmp.eq.s32.totalorder %s40, 1
      %p105 = por %p103, %p104
      %p107 = scmp.ne.s32.totalorder %s92, %s106
      %p108 = scmp.eq.s32.totalorder %s40, 0
      %p109 = por %p107, %p108
      %s111 = sadd.s32 %s110, 1
      %p114 = scmp.eq.s32.totalorder %s34, 1
      %p115 = scmp.ne.s32.totalorder %s110, %s112
      %p116 = scmp.eq.s32.totalorder %s34, 0
      %p117 = por %p115, %p116
      %p118 = scmp.ne.s32.totalorder %s110, %s112
      %p119 = scmp.eq.s32.totalorder %s39, 1
      %p120 = por %p118, %p119
      %p121 = scmp.ne.s32.totalorder %s112, %s113
      %p122 = scmp.eq.s32.totalorder %s39, 0
      %p123 = por %p121, %p122
      %p124 = scmp.ne.s32.totalorder %s112, %s113
      %p125 = scmp.eq.s32.totalorder %s40, 1
      %p126 = por %p124, %p125
      %p128 = scmp.ne.s32.totalorder %s113, %s127
      %p129 = scmp.eq.s32.totalorder %s40, 0
      %p130 = por %p128, %p129
      %s132 = sadd.s32 %s131, 1
      %p135 = scmp.eq.s32.totalorder %s34, 1
      %p136 = scmp.ne.s32.totalorder %s131, %s133
      %p137 = scmp.eq.s32.totalorder %s34, 0
      %p138 = por %p136, %p137
      %p139 = scmp.ne.s32.totalorder %s131, %s133
      %p140 = scmp.eq.s32.totalorder %s39, 1
      %p141 = por %p139, %p140
      %p142 = scmp.ne.s32.totalorder %s133, %s134
      %p143 = scmp.eq.s32.totalorder %s39, 0
      %p144 = por %p142, %p143
      %p145 = scmp.ne.s32.totalorder %s133, %s134
      %p146 = scmp.eq.s32.totalorder %s40, 1
      %p147 = por %p145, %p146
      %p149 = scmp.ne.s32.totalorder %s134, %s148
      %p150 = scmp.eq.s32.totalorder %s40, 0
      %p151 = por %p149, %p150
      %s153 = sadd.s32 %s152, 1
      %p156 = scmp.eq.s32.totalorder %s34, 1
      %p157 = scmp.ne.s32.totalorder %s152, %s154
      %p158 = scmp.eq.s32.totalorder %s34, 0
      %p159 = por %p157, %p158
      %p160 = scmp.ne.s32.totalorder %s152, %s154
      %p161 = scmp.eq.s32.totalorder %s39, 1
      %p162 = por %p160, %p161
      %p163 = scmp.ne.s32.totalorder %s154, %s155
      %p164 = scmp.eq.s32.totalorder %s39, 0
      %p165 = por %p163, %p164
      %p166 = scmp.ne.s32.totalorder %s154, %s155
      %p167 = scmp.eq.s32.totalorder %s40, 1
      %p168 = por %p166, %p167
      %p170 = scmp.ne.s32.totalorder %s155, %s169
      %p171 = scmp.eq.s32.totalorder %s40, 0
      %p172 = por %p170, %p171
      %s174 = sadd.s32 %s173, 1
      %p177 = scmp.eq.s32.totalorder %s34, 1
      %p178 = scmp.ne.s32.totalorder %s173, %s175
      %p179 = scmp.eq.s32.totalorder %s34, 0
      %p180 = por %p178, %p179
      %p181 = scmp.ne.s32.totalorder %s173, %s175
      %p182 = scmp.eq.s32.totalorder %s39, 1
      %p183 = por %p181, %p182
      %p184 = scmp.ne.s32.totalorder %s175, %s176
      %p185 = scmp.eq.s32.totalorder %s39, 0
      %p186 = por %p184, %p185
      %p187 = scmp.ne.s32.totalorder %s175, %s176
      %p188 = scmp.eq.s32.totalorder %s40, 1
      %p189 = por %p187, %p188
      %p191 = scmp.ne.s32.totalorder %s176, %s190
      %p192 = scmp.eq.s32.totalorder %s40, 0
      %p193 = por %p191, %p192
      %s195 = sadd.s32 %s194, 1
      %p198 = scmp.eq.s32.totalorder %s34, 1
      %p199 = scmp.ne.s32.totalorder %s194, %s196
      %p200 = scmp.eq.s32.totalorder %s34, 0
      %p201 = por %p199, %p200
      %p202 = scmp.ne.s32.totalorder %s194, %s196
      %p203 = scmp.eq.s32.totalorder %s39, 1
      %p204 = por %p202, %p203
      %p205 = scmp.ne.s32.totalorder %s196, %s197
      %p206 = scmp.eq.s32.totalorder %s39, 0
      %p207 = por %p205, %p206
      %p208 = scmp.ne.s32.totalorder %s196, %s197
      %p209 = scmp.eq.s32.totalorder %s40, 1
      %p210 = por %p208, %p209
      %p212 = scmp.ne.s32.totalorder %s197, %s211
      %p213 = scmp.eq.s32.totalorder %s40, 0
      %p214 = por %p212, %p213
      %s216 = sadd.s32 %s215, 1
      %p219 = scmp.eq.s32.totalorder %s34, 1
      %p220 = scmp.ne.s32.totalorder %s215, %s217
      %p221 = scmp.eq.s32.totalorder %s34, 0
      %p222 = por %p220, %p221
      %p223 = scmp.ne.s32.totalorder %s215, %s217
      %p224 = scmp.eq.s32.totalorder %s39, 1
      %p225 = por %p223, %p224
      %p226 = scmp.ne.s32.totalorder %s217, %s218
      %p227 = scmp.eq.s32.totalorder %s39, 0
      %p228 = por %p226, %p227
      %p229 = scmp.ne.s32.totalorder %s217, %s218
      %p230 = scmp.eq.s32.totalorder %s40, 1
      %p231 = por %p229, %p230
      %p233 = scmp.ne.s32.totalorder %s218, %s232
      %p234 = scmp.eq.s32.totalorder %s40, 0
      %p235 = por %p233, %p234
      %s237 = sadd.s32 %s236, 1
      %p240 = scmp.eq.s32.totalorder %s34, 1
      %p241 = scmp.ne.s32.totalorder %s236, %s238
      %p242 = scmp.eq.s32.totalorder %s34, 0
      %p243 = por %p241, %p242
      %p244 = scmp.ne.s32.totalorder %s236, %s238
      %p245 = scmp.eq.s32.totalorder %s39, 1
      %p246 = por %p244, %p245
      %p247 = scmp.ne.s32.totalorder %s238, %s239
      %p248 = scmp.eq.s32.totalorder %s39, 0
      %p249 = por %p247, %p248
      %p250 = scmp.ne.s32.totalorder %s238, %s239
      %p251 = scmp.eq.s32.totalorder %s40, 1
      %p252 = por %p250, %p251
      %p254 = scmp.ne.s32.totalorder %s239, %s253
      %p255 = scmp.eq.s32.totalorder %s40, 0
      %p256 = por %p254, %p255
      %s258 = sadd.s32 %s257, 1
      %p261 = scmp.eq.s32.totalorder %s34, 1
      %p262 = scmp.ne.s32.totalorder %s257, %s259
      %p263 = scmp.eq.s32.totalorder %s34, 0
      %p264 = por %p262, %p263
      %p265 = scmp.ne.s32.totalorder %s257, %s259
      %p266 = scmp.eq.s32.totalorder %s39, 1
      %p267 = por %p265, %p266
      %p268 = scmp.ne.s32.totalorder %s259, %s260
      %p269 = scmp.eq.s32.totalorder %s39, 0
      %p270 = por %p268, %p269
      %p271 = scmp.ne.s32.totalorder %s259, %s260
      %p272 = scmp.eq.s32.totalorder %s40, 1
      %p273 = por %p271, %p272
      %p275 = scmp.ne.s32.totalorder %s260, %s274
      %p276 = scmp.eq.s32.totalorder %s40, 0
      %p277 = por %p275, %p276
      %s279 = sadd.s32 %s278, 1
      %p282 = scmp.eq.s32.totalorder %s34, 1
      %p283 = scmp.ne.s32.totalorder %s278, %s280
      %p284 = scmp.eq.s32.totalorder %s34, 0
      %p285 = por %p283, %p284
      %p286 = scmp.ne.s32.totalorder %s278, %s280
      %p287 = scmp.eq.s32.totalorder %s39, 1
      %p288 = por %p286, %p287
      %p289 = scmp.ne.s32.totalorder %s280, %s281
      %p290 = scmp.eq.s32.totalorder %s39, 0
      %p291 = por %p289, %p290
      %p292 = scmp.ne.s32.totalorder %s280, %s281
      %p293 = scmp.eq.s32.totalorder %s40, 1
      %p294 = por %p292, %p293
      %p296 = scmp.ne.s32.totalorder %s281, %s295
      %p297 = scmp.eq.s32.totalorder %s40, 0
      %p298 = por %p296, %p297
      %s300 = sadd.s32 %s299, 1
      %p303 = scmp.eq.s32.totalorder %s34, 1
      %p304 = scmp.ne.s32.totalorder %s299, %s301
      %p305 = scmp.eq.s32.totalorder %s34, 0
      %p306 = por %p304, %p305
      %p307 = scmp.ne.s32.totalorder %s299, %s301
      %p308 = scmp.eq.s32.totalorder %s39, 1
      %p309 = por %p307, %p308
      %p310 = scmp.ne.s32.totalorder %s301, %s302
      %p311 = scmp.eq.s32.totalorder %s39, 0
      %p312 = por %p310, %p311
      %p313 = scmp.ne.s32.totalorder %s301, %s302
      %p314 = scmp.eq.s32.totalorder %s40, 1
      %p315 = por %p313, %p314
      %p317 = scmp.ne.s32.totalorder %s302, %s316
      %p318 = scmp.eq.s32.totalorder %s40, 0
      %p319 = por %p317, %p318
      %s321 = sadd.s32 %s320, 1
      %p324 = scmp.eq.s32.totalorder %s34, 1
      %p325 = scmp.ne.s32.totalorder %s320, %s322
      %p326 = scmp.eq.s32.totalorder %s34, 0
      %p327 = por %p325, %p326
      %p328 = scmp.ne.s32.totalorder %s320, %s322
      %p329 = scmp.eq.s32.totalorder %s39, 1
      %p330 = por %p328, %p329
      %p331 = scmp.ne.s32.totalorder %s322, %s323
      %p332 = scmp.eq.s32.totalorder %s39, 0
      %p333 = por %p331, %p332
      %p334 = scmp.ne.s32.totalorder %s322, %s323
      %p335 = scmp.eq.s32.totalorder %s40, 1
      %p336 = por %p334, %p335
      %p338 = scmp.ne.s32.totalorder %s323, %s337
      %p339 = scmp.eq.s32.totalorder %s40, 0
      %p340 = por %p338, %p339
      %s342 = sadd.s32 %s341, 1
      %p345 = scmp.eq.s32.totalorder %s34, 1
      %p346 = scmp.ne.s32.totalorder %s341, %s343
      %p347 = scmp.eq.s32.totalorder %s34, 0
      %p348 = por %p346, %p347
      %p349 = scmp.ne.s32.totalorder %s341, %s343
      %p350 = scmp.eq.s32.totalorder %s39, 1
      %p351 = por %p349, %p350
      %p352 = scmp.ne.s32.totalorder %s343, %s344
      %p353 = scmp.eq.s32.totalorder %s39, 0
      %p354 = por %p352, %p353
      %p355 = scmp.ne.s32.totalorder %s343, %s344
      %p356 = scmp.eq.s32.totalorder %s40, 1
      %p357 = por %p355, %p356
      %p359 = scmp.ne.s32.totalorder %s344, %s358
      %p360 = scmp.eq.s32.totalorder %s40, 0
      %p361 = por %p359, %p360
      %s363 = sadd.s32 %s362, 1
      %p366 = scmp.eq.s32.totalorder %s34, 1
      %p367 = scmp.ne.s32.totalorder %s362, %s364
      %p368 = scmp.eq.s32.totalorder %s34, 0
      %p369 = por %p367, %p368
      %p370 = scmp.ne.s32.totalorder %s362, %s364
      %p371 = scmp.eq.s32.totalorder %s39, 1
      %p372 = por %p370, %p371
      %p373 = scmp.ne.s32.totalorder %s364, %s365
      %p374 = scmp.eq.s32.totalorder %s39, 0
      %p375 = por %p373, %p374
      %p376 = scmp.ne.s32.totalorder %s364, %s365
      %p377 = scmp.eq.s32.totalorder %s40, 1
      %p378 = por %p376, %p377
      %p380 = scmp.ne.s32.totalorder %s365, %s379
      %p381 = scmp.eq.s32.totalorder %s40, 0
      %p382 = por %p380, %p381
      %s384 = sadd.s32 %s383, 1
      %p387 = scmp.eq.s32.totalorder %s34, 1
      %p388 = scmp.ne.s32.totalorder %s383, %s385
      %p389 = scmp.eq.s32.totalorder %s34, 0
      %p390 = por %p388, %p389
      %p391 = scmp.ne.s32.totalorder %s383, %s385
      %p392 = scmp.eq.s32.totalorder %s39, 1
      %p393 = por %p391, %p392
      %p394 = scmp.ne.s32.totalorder %s385, %s386
      %p395 = scmp.eq.s32.totalorder %s39, 0
      %p396 = por %p394, %p395
      %p397 = scmp.ne.s32.totalorder %s385, %s386
      %p398 = scmp.eq.s32.totalorder %s40, 1
      %p399 = por %p397, %p398
      %p401 = scmp.ne.s32.totalorder %s386, %s400
      %p402 = scmp.eq.s32.totalorder %s40, 0
      %p403 = por %p401, %p402
      %s405 = sadd.s32 %s404, 1
      %p408 = scmp.eq.s32.totalorder %s34, 1
      %p409 = scmp.ne.s32.totalorder %s404, %s406
      %p410 = scmp.eq.s32.totalorder %s34, 0
      %p411 = por %p409, %p410
      %p412 = scmp.ne.s32.totalorder %s404, %s406
      %p413 = scmp.eq.s32.totalorder %s39, 1
      %p414 = por %p412, %p413
      %p415 = scmp.ne.s32.totalorder %s406, %s407
      %p416 = scmp.eq.s32.totalorder %s39, 0
      %p417 = por %p415, %p416
      %p418 = scmp.ne.s32.totalorder %s406, %s407
      %p419 = scmp.eq.s32.totalorder %s40, 1
      %p420 = por %p418, %p419
      %p422 = scmp.ne.s32.totalorder %s407, %s421
      %p423 = scmp.eq.s32.totalorder %s40, 0
      %p424 = por %p422, %p423
      %s426 = sadd.s32 %s425, 1
      %p429 = scmp.eq.s32.totalorder %s34, 1
      %p430 = scmp.ne.s32.totalorder %s425, %s427
      %p431 = scmp.eq.s32.totalorder %s34, 0
      %p432 = por %p430, %p431
      %p433 = scmp.ne.s32.totalorder %s425, %s427
      %p434 = scmp.eq.s32.totalorder %s39, 1
      %p435 = por %p433, %p434
      %p436 = scmp.ne.s32.totalorder %s427, %s428
      %p437 = scmp.eq.s32.totalorder %s39, 0
      %p438 = por %p436, %p437
      %p439 = scmp.ne.s32.totalorder %s427, %s428
      %p440 = scmp.eq.s32.totalorder %s40, 1
      %p441 = por %p439, %p440
      %p443 = scmp.ne.s32.totalorder %s428, %s442
      %p444 = scmp.eq.s32.totalorder %s40, 0
      %p445 = por %p443, %p444
      %s447 = sadd.s32 %s446, 1
      %p450 = scmp.eq.s32.totalorder %s34, 1
      %p451 = scmp.ne.s32.totalorder %s446, %s448
      %p452 = scmp.eq.s32.totalorder %s34, 0
      %p453 = por %p451, %p452
      %p454 = scmp.ne.s32.totalorder %s446, %s448
      %p455 = scmp.eq.s32.totalorder %s39, 1
      %p456 = por %p454, %p455
      %p457 = scmp.ne.s32.totalorder %s448, %s449
      %p458 = scmp.eq.s32.totalorder %s39, 0
      %p459 = por %p457, %p458
      %p460 = scmp.ne.s32.totalorder %s448, %s449
      %p461 = scmp.eq.s32.totalorder %s40, 1
      %p462 = por %p460, %p461
      %p464 = scmp.ne.s32.totalorder %s449, %s463
      %p465 = scmp.eq.s32.totalorder %s40, 0
      %p466 = por %p464, %p465
      %s468 = sadd.s32 %s467, 1
      %p471 = scmp.eq.s32.totalorder %s34, 1
      %p472 = scmp.ne.s32.totalorder %s467, %s469
      %p473 = scmp.eq.s32.totalorder %s34, 0
      %p474 = por %p472, %p473
      %p475 = scmp.ne.s32.totalorder %s467, %s469
      %p476 = scmp.eq.s32.totalorder %s39, 1
      %p477 = por %p475, %p476
      %p478 = scmp.ne.s32.totalorder %s469, %s470
      %p479 = scmp.eq.s32.totalorder %s39, 0
      %p480 = por %p478, %p479
      %p481 = scmp.ne.s32.totalorder %s469, %s470
      %p482 = scmp.eq.s32.totalorder %s40, 1
      %p483 = por %p481, %p482
      %p485 = scmp.ne.s32.totalorder %s470, %s484
      %p486 = scmp.eq.s32.totalorder %s40, 0
      %p487 = por %p485, %p486
      %s488 = ssub.s32 %s34, %s41
      %p489 = scmp.eq.s32.totalorder %s488, 0
      %s491 = sadd.s32 %s490, 1
      %s492 = scalar_select %p489, %s490, %s491
      %p495 = pneg %p489
      %p496 = scmp.eq.s32.totalorder %s34, 1
      %p497 = por %p495, %p496
      %p498 = scmp.ne.s32.totalorder %s490, %s493
      %p499 = scmp.eq.s32.totalorder %s34, 0
      %p500 = por %p498, %p499
      %p501 = scmp.ne.s32.totalorder %s490, %s493
      %p502 = scmp.eq.s32.totalorder %s39, 1
      %p503 = por %p501, %p502
      %p504 = scmp.ne.s32.totalorder %s493, %s494
      %p505 = scmp.eq.s32.totalorder %s39, 0
      %p506 = por %p504, %p505
      %p507 = scmp.ne.s32.totalorder %s493, %s494
      %p508 = scmp.eq.s32.totalorder %s40, 1
      %p509 = por %p507, %p508
      %p511 = scmp.ne.s32.totalorder %s494, %s510
      %p512 = scmp.eq.s32.totalorder %s40, 0
      %p513 = por %p511, %p512
      %p514 = scmp.le.s32.totalorder 1, %s34
      %p515 = scmp.lt.s32.totalorder %s34, 3
      %p516 = pnand %p514, %p515
      %p517 = pneg %p516
      // Predicated region
      $region9: #{tpu_custom_call.1} parent=5 // pred_check
        _
      $region10: #{tpu_custom_call.1} parent=5 // pred_check_branch
        %519 = sbr.rel (%p516) target = $region12
      $region11: #{tpu_custom_call.1} parent=5 // pred_region
        %s520 = ssub.s32 %s34, 1
        // Predicated region
        $region13: #{tpu_custom_call.1} parent=11 // pred_check
          %p521 = pneg %p81
        $region14: #{tpu_custom_call.1} parent=11 // pred_check_branch
          %523 = sbr.rel (%p521) target = $region16
        $region15: #{tpu_custom_call.1} parent=11 // pred_region
          %s525 = ssub.s32 64, 64
          %526 = vsyncadd [#allocation3], %s525
          %s528 = sshll.u32 [#allocation2], 4
          %s529 = int_to_ptr.vmem [resolvable:$true] %s528
          %531 = dma.hbm_to_vmem [thread:$0]  %s1, 64, %s529, [#allocation3]
        $region16: #{tpu_custom_call.1} parent=11 // pred_fallthru
          _
        // Predicated region
        $region17: #{tpu_custom_call.1} parent=11 // pred_check
          %p532 = pneg %p102
        $region18: #{tpu_custom_call.1} parent=11 // pred_check_branch
          %534 = sbr.rel (%p532) target = $region20
        $region19: #{tpu_custom_call.1} parent=11 // pred_region
          %s536 = ssub.s32 16, 16
          %537 = vsyncadd [#allocation6], %s536
          %s539 = sshll.u32 [#allocation5], 4
          %s540 = int_to_ptr.vmem [resolvable:$true] %s539
          %542 = dma.hbm_to_vmem [thread:$0]  %s2, 16, %s540, [#allocation6]
        $region20: #{tpu_custom_call.1} parent=11 // pred_fallthru
          _
        // Predicated region
        $region21: #{tpu_custom_call.1} parent=11 // pred_check
          %p543 = pneg %p123
        $region22: #{tpu_custom_call.1} parent=11 // pred_check_branch
          %545 = sbr.rel (%p543) target = $region24
        $region23: #{tpu_custom_call.1} parent=11 // pred_region
          %s547 = ssub.s32 16, 16
          %548 = vsyncadd [#allocation6], %s547
          %s550 = sshll.u32 [#allocation7], 4
          %s551 = int_to_ptr.vmem [resolvable:$true] %s550
          %553 = dma.hbm_to_vmem [thread:$0]  %s3, 16, %s551, [#allocation6]
        $region24: #{tpu_custom_call.1} parent=11 // pred_fallthru
          _
        // Predicated region
        $region25: #{tpu_custom_call.1} parent=11 // pred_check
          %p554 = pneg %p144
        $region26: #{tpu_custom_call.1} parent=11 // pred_check_branch
          %556 = sbr.rel (%p554) target = $region28
        $region27: #{tpu_custom_call.1} parent=11 // pred_region
          _
        $region28: #{tpu_custom_call.1} parent=11 // pred_fallthru
          _
        // Predicated region
        $region29: #{tpu_custom_call.1} parent=11 // pred_check
          %p557 = pneg %p165
        $region30: #{tpu_custom_call.1} parent=11 // pred_check_branch
          %559 = sbr.rel (%p557) target = $region32
        $region31: #{tpu_custom_call.1} parent=11 // pred_region
          %s561 = ssub.s32 16, 16
          %562 = vsyncadd [#allocation9], %s561
          %s564 = sshll.u32 [#allocation8], 4
          %s565 = int_to_ptr.vmem [resolvable:$true] %s564
          %567 = dma.hbm_to_vmem [thread:$0]  %s5, 16, %s565, [#allocation9]
        $region32: #{tpu_custom_call.1} parent=11 // pred_fallthru
          _
        // Predicated region
        $region33: #{tpu_custom_call.1} parent=11 // pred_check
          %p568 = pneg %p186
        $region34: #{tpu_custom_call.1} parent=11 // pred_check_branch
          %570 = sbr.rel (%p568) target = $region36
        $region35: #{tpu_custom_call.1} parent=11 // pred_region
          _
        $region36: #{tpu_custom_call.1} parent=11 // pred_fallthru
          _
        // Predicated region
        $region37: #{tpu_custom_call.1} parent=11 // pred_check
          %p571 = pneg %p207
        $region38: #{tpu_custom_call.1} parent=11 // pred_check_branch
          %573 = sbr.rel (%p571) target = $region40
        $region39: #{tpu_custom_call.1} parent=11 // pred_region
          %s575 = ssub.s32 16, 16
          %576 = vsyncadd [#allocation9], %s575
          %s578 = sshll.u32 [#allocation10], 4
          %s579 = int_to_ptr.vmem [resolvable:$true] %s578
          %581 = dma.hbm_to_vmem [thread:$0]  %s7, 16, %s579, [#allocation9]
        $region40: #{tpu_custom_call.1} parent=11 // pred_fallthru
          _
        // Predicated region
        $region41: #{tpu_custom_call.1} parent=11 // pred_check
          %p582 = pneg %p228
        $region42: #{tpu_custom_call.1} parent=11 // pred_check_branch
          %584 = sbr.rel (%p582) target = $region44
        $region43: #{tpu_custom_call.1} parent=11 // pred_region
          _
        $region44: #{tpu_custom_call.1} parent=11 // pred_fallthru
          _
        // Predicated region
        $region45: #{tpu_custom_call.1} parent=11 // pred_check
          %p585 = pneg %p249
        $region46: #{tpu_custom_call.1} parent=11 // pred_check_branch
          %587 = sbr.rel (%p585) target = $region48
        $region47: #{tpu_custom_call.1} parent=11 // pred_region
          %s589 = ssub.s32 16, 16
          %590 = vsyncadd [#allocation12], %s589
          %s592 = sshll.u32 [#allocation11], 4
          %s593 = int_to_ptr.vmem [resolvable:$true] %s592
          %595 = dma.hbm_to_vmem [thread:$0]  %s9, 16, %s593, [#allocation12]
        $region48: #{tpu_custom_call.1} parent=11 // pred_fallthru
          _
        // Predicated region
        $region49: #{tpu_custom_call.1} parent=11 // pred_check
          %p596 = pneg %p270
        $region50: #{tpu_custom_call.1} parent=11 // pred_check_branch
          %598 = sbr.rel (%p596) target = $region52
        $region51: #{tpu_custom_call.1} parent=11 // pred_region
          _
        $region52: #{tpu_custom_call.1} parent=11 // pred_fallthru
          _
        // Predicated region
        $region53: #{tpu_custom_call.1} parent=11 // pred_check
          %p599 = pneg %p291
        $region54: #{tpu_custom_call.1} parent=11 // pred_check_branch
          %601 = sbr.rel (%p599) target = $region56
        $region55: #{tpu_custom_call.1} parent=11 // pred_region
          _
        $region56: #{tpu_custom_call.1} parent=11 // pred_fallthru
          _
        // Predicated region
        $region57: #{tpu_custom_call.1} parent=11 // pred_check
          %p602 = pneg %p312
        $region58: #{tpu_custom_call.1} parent=11 // pred_check_branch
          %604 = sbr.rel (%p602) target = $region60
        $region59: #{tpu_custom_call.1} parent=11 // pred_region
          _
        $region60: #{tpu_custom_call.1} parent=11 // pred_fallthru
          _
        // Predicated region
        $region61: #{tpu_custom_call.1} parent=11 // pred_check
          %p605 = pneg %p333
        $region62: #{tpu_custom_call.1} parent=11 // pred_check_branch
          %607 = sbr.rel (%p605) target = $region64
        $region63: #{tpu_custom_call.1} parent=11 // pred_region
          _
        $region64: #{tpu_custom_call.1} parent=11 // pred_fallthru
          _
        // Predicated region
        $region65: #{tpu_custom_call.1} parent=11 // pred_check
          %p608 = pneg %p354
        $region66: #{tpu_custom_call.1} parent=11 // pred_check_branch
          %610 = sbr.rel (%p608) target = $region68
        $region67: #{tpu_custom_call.1} parent=11 // pred_region
          _
        $region68: #{tpu_custom_call.1} parent=11 // pred_fallthru
          _
        // Predicated region
        $region69: #{tpu_custom_call.1} parent=11 // pred_check
          %p611 = pneg %p375
        $region70: #{tpu_custom_call.1} parent=11 // pred_check_branch
          %613 = sbr.rel (%p611) target = $region72
        $region71: #{tpu_custom_call.1} parent=11 // pred_region
          _
        $region72: #{tpu_custom_call.1} parent=11 // pred_fallthru
          _
        // Predicated region
        $region73: #{tpu_custom_call.1} parent=11 // pred_check
          %p614 = pneg %p396
        $region74: #{tpu_custom_call.1} parent=11 // pred_check_branch
          %616 = sbr.rel (%p614) target = $region76
        $region75: #{tpu_custom_call.1} parent=11 // pred_region
          _
        $region76: #{tpu_custom_call.1} parent=11 // pred_fallthru
          _
        // Predicated region
        $region77: #{tpu_custom_call.1} parent=11 // pred_check
          %p617 = pneg %p417
        $region78: #{tpu_custom_call.1} parent=11 // pred_check_branch
          %619 = sbr.rel (%p617) target = $region80
        $region79: #{tpu_custom_call.1} parent=11 // pred_region
          _
        $region80: #{tpu_custom_call.1} parent=11 // pred_fallthru
          _
        // Predicated region
        $region81: #{tpu_custom_call.1} parent=11 // pred_check
          %p620 = pneg %p438
        $region82: #{tpu_custom_call.1} parent=11 // pred_check_branch
          %622 = sbr.rel (%p620) target = $region84
        $region83: #{tpu_custom_call.1} parent=11 // pred_region
          _
        $region84: #{tpu_custom_call.1} parent=11 // pred_fallthru
          _
        // Predicated region
        $region85: #{tpu_custom_call.1} parent=11 // pred_check
          %p623 = pneg %p459
        $region86: #{tpu_custom_call.1} parent=11 // pred_check_branch
          %625 = sbr.rel (%p623) target = $region88
        $region87: #{tpu_custom_call.1} parent=11 // pred_region
          _
        $region88: #{tpu_custom_call.1} parent=11 // pred_fallthru
          _
        // Predicated region
        $region89: #{tpu_custom_call.1} parent=11 // pred_check
          %p626 = pneg %p480
        $region90: #{tpu_custom_call.1} parent=11 // pred_check_branch
          %628 = sbr.rel (%p626) target = $region92
        $region91: #{tpu_custom_call.1} parent=11 // pred_region
          _
        $region92: #{tpu_custom_call.1} parent=11 // pred_fallthru
          _
      $region12: #{tpu_custom_call.1} parent=5 // pred_fallthru
        _
      %p629 = scmp.lt.s32.totalorder %s34, 2
      // Predicated region
      $region93: #{tpu_custom_call.1} parent=5 // pred_check
        %p630 = pneg %p629
      $region94: #{tpu_custom_call.1} parent=5 // pred_check_branch
        %632 = sbr.rel (%p630) target = $region96
      $region95: #{tpu_custom_call.1} parent=5 // pred_region
        // Predicated region
        $region97: #{tpu_custom_call.1} parent=95 // pred_check
          %p633 = pneg %p54
        $region98: #{tpu_custom_call.1} parent=95 // pred_check_branch
          %635 = sbr.rel (%p633) target = $region100
        $region99: #{tpu_custom_call.1} parent=95 // pred_region
          %p636 = scmp.lt.s32.totalorder %s34, 1
          %s637 = scalar_select %p636, %s34, 1
          %s638 = smul.addr %s637, 8
          %s639 = scalar_lea.vmem %s0, %s638
        $region100: #{tpu_custom_call.1} parent=95 // pred_fallthru
          _
      $region96: #{tpu_custom_call.1} parent=5 // pred_fallthru
        _
      %p640 = scmp.le.s32.totalorder 1, %s34
      %p641 = scmp.lt.s32.totalorder %s34, 3
      %p642 = pnand %p640, %p641
      %p643 = pneg %p642
      // Predicated region
      $region101: #{tpu_custom_call.1} parent=5 // pred_check
        _
      $region102: #{tpu_custom_call.1} parent=5 // pred_check_branch
        %645 = sbr.rel (%p642) target = $region104
      $region103: #{tpu_custom_call.1} parent=5 // pred_region
        %s646 = ssub.s32 %s34, 1
        // Predicated region
        $region105: #{tpu_custom_call.1} parent=103 // pred_check
          %p647 = pneg %p81
        $region106: #{tpu_custom_call.1} parent=103 // pred_check_branch
          %649 = sbr.rel (%p647) target = $region108
        $region107: #{tpu_custom_call.1} parent=103 // pred_region
          %650 = dma.done [#allocation3], 64
        $region108: #{tpu_custom_call.1} parent=103 // pred_fallthru
          _
        // Predicated region
        $region109: #{tpu_custom_call.1} parent=103 // pred_check
          %p651 = pneg %p102
        $region110: #{tpu_custom_call.1} parent=103 // pred_check_branch
          %653 = sbr.rel (%p651) target = $region112
        $region111: #{tpu_custom_call.1} parent=103 // pred_region
          %654 = dma.done [#allocation6], 16
        $region112: #{tpu_custom_call.1} parent=103 // pred_fallthru
          _
        // Predicated region
        $region113: #{tpu_custom_call.1} parent=103 // pred_check
          %p655 = pneg %p123
        $region114: #{tpu_custom_call.1} parent=103 // pred_check_branch
          %657 = sbr.rel (%p655) target = $region116
        $region115: #{tpu_custom_call.1} parent=103 // pred_region
          %658 = dma.done [#allocation6], 16
        $region116: #{tpu_custom_call.1} parent=103 // pred_fallthru
          _
        // Predicated region
        $region117: #{tpu_custom_call.1} parent=103 // pred_check
          %p659 = pneg %p165
        $region118: #{tpu_custom_call.1} parent=103 // pred_check_branch
          %661 = sbr.rel (%p659) target = $region120
        $region119: #{tpu_custom_call.1} parent=103 // pred_region
          %662 = dma.done [#allocation9], 16
        $region120: #{tpu_custom_call.1} parent=103 // pred_fallthru
          _
        // Predicated region
        $region121: #{tpu_custom_call.1} parent=103 // pred_check
          %p663 = pneg %p207
        $region122: #{tpu_custom_call.1} parent=103 // pred_check_branch
          %665 = sbr.rel (%p663) target = $region124
        $region123: #{tpu_custom_call.1} parent=103 // pred_region
          %666 = dma.done [#allocation9], 16
        $region124: #{tpu_custom_call.1} parent=103 // pred_fallthru
          _
        // Predicated region
        $region125: #{tpu_custom_call.1} parent=103 // pred_check
          %p667 = pneg %p249
        $region126: #{tpu_custom_call.1} parent=103 // pred_check_branch
          %669 = sbr.rel (%p667) target = $region128
        $region127: #{tpu_custom_call.1} parent=103 // pred_region
          %670 = dma.done [#allocation12], 16
        $region128: #{tpu_custom_call.1} parent=103 // pred_fallthru
          _
        %p671 = scmp.lt.s32.totalorder %s39, 1
        %s672 = scalar_select %p671, %s39, 1
        %s673 = smul.addr %s672, 8
        %s674 = scalar_lea.vmem %s0, %s673
        %p675 = pneg %p60
        %p676 = pneg %p57
        %p677 = pneg %p81
        %p678 = pneg %p78
        %p679 = pneg %p102
        %p680 = pneg %p99
        %p681 = pneg %p123
        %p682 = pneg %p120
        %p683 = pneg %p144
        %p684 = pneg %p141
        %p685 = pneg %p165
        %p686 = pneg %p162
        %p687 = pneg %p186
        %p688 = pneg %p183
        %p689 = pneg %p207
        %p690 = pneg %p204
        %p691 = pneg %p228
        %p692 = pneg %p225
        %p693 = pneg %p249
        %p694 = pneg %p246
        %p695 = pneg %p270
        %p696 = pneg %p267
        %p697 = pneg %p291
        %p698 = pneg %p288
        %p699 = pneg %p312
        %p700 = pneg %p309
        %p701 = pneg %p333
        %p702 = pneg %p330
        %p703 = pneg %p354
        %p704 = pneg %p351
        %p705 = pneg %p375
        %p706 = pneg %p372
        %p707 = pneg %p396
        %p708 = pneg %p393
        %p709 = pneg %p417
        %p710 = pneg %p414
        %p711 = pneg %p438
        %p712 = pneg %p435
        %p713 = pneg %p459
        %p714 = pneg %p456
        %p715 = pneg %p480
        %p716 = pneg %p477
        %p717 = pneg %p506
        %p718 = pneg %p503
        %s719 = sand.u32 %s493, 1
        %s720 = scalar_lea.sflag [#allocation4], %s719
        %s721 = sand.u32 %s493, 1
        %s722 = scalar_lea.vmem [#allocation13], %s721
        %p723 = scmp.lt.s32.totalorder %s39, 1
        %s724 = scalar_select %p723, %s39, 1
        %s725 = smul.addr %s724, 8
        %s726 = scalar_lea.vmem %s0, %s725
        %v727 = vld [vmem:[%s726] sm:$0xff]
        %v728 = vld [vmem:[#allocation2] sm:$0xf]
        %v729 = vld [vmem:[#allocation5] sm:$0x1]
        %v730 = vld [vmem:[#allocation7] sm:$0x1]
        %v731 = vld [vmem:[%s4] sm:$0xff]
        %v732 = vld [vmem:[%s4 + $0x8] sm:$0xff]
        %v733 = vld [vmem:[%s4 + $0x10] sm:$0xff]
        %v734 = vld [vmem:[%s4 + $0x18] sm:$0xff]
        %v735 = vld [vmem:[#allocation8] sm:$0x1]
        %v736 = vld [vmem:[%s6] sm:$0xff]
        %v737 = vld [vmem:[%s6 + $0x8] sm:$0xff]
        %v738 = vld [vmem:[%s6 + $0x10] sm:$0xf]
        %v739 = vld [vmem:[#allocation10] sm:$0x1]
        %v740 = vld [vmem:[%s8] sm:$0xff]
        %v741 = vld [vmem:[%s8 + $0x8] sm:$0xff]
        %v742 = vld [vmem:[%s8 + $0x10] sm:$0xff]
        %v743 = vld [vmem:[%s8 + $0x18] sm:$0xff]
        %v744 = vld [vmem:[#allocation11] sm:$0x1]
        %vm745 = vcmask 31744
        %v747 = vsel %vm745, %v727, 0
        %749 = vmatprep.subr.mxu0 0.0
        %750 = vmatpush1.xpose.msra.mxu0 0.0
        %751 = vmatprep.subr.mxu0 0.0
        %752 = vmatpush1.xpose.msra.mxu0 0.0
        %753 = vmatprep.subr.mxu0 0.0
        %754 = vmatpush1.xpose.msra.mxu0 0.0
        %755 = vmatprep.subr.mxu0 0.0
        %756 = vmatpush1.xpose.msra.mxu0 0.0
        %757 = vmatprep.subr.mxu0 0.0
        %758 = vmatpush1.xpose.msra.mxu0 0.0
        %759 = vmatprep.subr.mxu0 0.0
        %760 = vmatpush1.xpose.msra.mxu0 0.0
        %761 = vmatprep.subr.mxu0 0.0
        %762 = vmatpush1.xpose.msra.mxu0 0.0
        %763 = vmatprep.subr.mxu0 0.0
        %764 = vmatpush1.xpose.msra.mxu0 0.0
        %765 = vmatprep.subr.mxu0 0.0
        %766 = vmatpush1.xpose.msra.mxu0 0.0
        %767 = vmatprep.subr.mxu0 0.0
        %768 = vmatpush1.xpose.msra.mxu0 0.0
        %769 = vmatprep.subr.mxu0 0.0
        %770 = vmatpush1.xpose.msra.mxu0 0.0
        %771 = vmatprep.subr.mxu0 0.0
        %772 = vmatpush1.xpose.msra.mxu0 0.0
        %773 = vmatprep.subr.mxu0 0.0
        %774 = vmatpush1.xpose.msra.mxu0 0.0
        %775 = vmatprep.subr.mxu0 0.0
        %776 = vmatpush1.xpose.msra.mxu0 0.0
        %777 = vmatprep.subr.mxu0 0.0
        %778 = vmatpush1.xpose.msra.mxu0 0.0
        %779 = vmatprep.subr.mxu0 0.0
        %780 = vmatpush1.xpose.msra.mxu0 %v747
        %781 = vmatprep.subr.mxu0 0.0
        %782 = vmatpush2.xpose.msra.mxu0 0.0
        %783 = vmatprep.subr.mxu0 0.0
        %784 = vmatpush2.xpose.msra.mxu0 0.0
        %785 = vmatprep.subr.mxu0 0.0
        %786 = vmatpush2.xpose.msra.mxu0 0.0
        %787 = vmatprep.subr.mxu0 0.0
        %788 = vmatpush2.xpose.msra.mxu0 0.0
        %789 = vmatprep.subr.mxu0 0.0
        %790 = vmatpush2.xpose.msra.mxu0 0.0
        %791 = vmatprep.subr.mxu0 0.0
        %792 = vmatpush2.xpose.msra.mxu0 0.0
        %793 = vmatprep.subr.mxu0 0.0
        %794 = vmatpush2.xpose.msra.mxu0 0.0
        %795 = vmatprep.subr.mxu0 0.0
        %796 = vmatpush2.xpose.msra.mxu0 0.0
        %797 = vmatprep.subr.mxu0 0.0
        %798 = vmatpush2.xpose.msra.mxu0 0.0
        %799 = vmatprep.subr.mxu0 0.0
        %800 = vmatpush2.xpose.msra.mxu0 0.0
        %801 = vmatprep.subr.mxu0 0.0
        %802 = vmatpush2.xpose.msra.mxu0 0.0
        %803 = vmatprep.subr.mxu0 0.0
        %804 = vmatpush2.xpose.msra.mxu0 0.0
        %805 = vmatprep.subr.mxu0 0.0
        %806 = vmatpush2.xpose.msra.mxu0 0.0
        %807 = vmatprep.subr.mxu0 0.0
        %808 = vmatpush2.xpose.msra.mxu0 0.0
        %809 = vmatprep.subr.mxu0 0.0
        %810 = vmatpush2.xpose.msra.mxu0 0.0
        %811 = vmatprep.subr.mxu0 0.0
        %812 = vmatpush2.xpose.msra.mxu0 0.0
        %813 = vmatprep.mubr.f32.mxu0 0.0
        %814 = vmatmul.mubr.f32.gmra.mxu0 %v747
        %v815 = vpop.f32.mrf.mxu0
        %v816 = vadd.f32 0.0, %v815
        %v817 = vpop.f32.mrf.mxu0
        %818 = vdwg.mxu0
        %v819 = vmul.f32 %v727, %v727
        %v820 = vsel %vm745, %v819, 0.0
        %821 = vadd.xlane.f32.xlu0 %v820
        %v822 = vpop.xlane.xlu0 %821
        %v824 = vlaneseq
        %v825 = vand.u32 %v824, 127
        %v826 = vlaneseq
        %v827 = vshrl.u32 %v826, 7
        %v828 = vsub.s32 %v825, %v827
        %v829 = vrot.slane %v822, %v828
        %vm830 = vcmask 1041409
        %vm831 = vcmask 1042434
        %v832 = vsel %vm831, %v829, %v829
        %vm833 = vcmask 1043459
        %v834 = vsel %vm833, %v829, %v832
        %vm835 = vcmask 1044484
        %v836 = vsel %vm835, %v829, %v834
        %vm837 = vcmask 1045509
        %v838 = vsel %vm837, %v829, %v836
        %vm839 = vcmask 1046534
        %v840 = vsel %vm839, %v829, %v838
        %vm841 = vcmask 1047559
        %v842 = vsel %vm841, %v829, %v840
        %v844 = vadd.f32 %v822, %v842
        %v845 = vmul.f32 %v816, 2.0
        %v846 = vsub.f32 %v844, %v845
        %v847 = vmax.f32 %v846, 0.0
        %v848 = vrsqrt.pop %v847
        %v849 = vmul.f32 %v847, %v848
        %vm850 = vcmp.eq.f32.partialorder %v847, inf
        %v851 = vsel %vm850, %v847, %v849
        %vm852 = vcmp.eq.f32.partialorder %v847, 0.0
        %v853 = vand.u32 %v847, 2147483648
        %v854 = vsel %vm852, %v853, %v851
        %vm855 = vcmask 1043456
        %v857 = vsel %vm855, %v728, 0
        %859 = vmatprep.subr.mxu0 0.0
        %860 = vmatpush1.msra.mxu0 0.0
        %861 = vmatprep.subr.mxu0 0.0
        %862 = vmatpush1.msra.mxu0 0.0
        %863 = vmatprep.subr.mxu0 0.0
        %864 = vmatpush1.msra.mxu0 0.0
        %865 = vmatprep.subr.mxu0 0.0
        %866 = vmatpush1.msra.mxu0 0.0
        %867 = vmatprep.subr.mxu0 0.0
        %868 = vmatpush1.msra.mxu0 0.0
        %869 = vmatprep.subr.mxu0 0.0
        %870 = vmatpush1.msra.mxu0 0.0
        %871 = vmatprep.subr.mxu0 0.0
        %872 = vmatpush1.msra.mxu0 0.0
        %873 = vmatprep.subr.mxu0 0.0
        %874 = vmatpush1.msra.mxu0 0.0
        %875 = vmatprep.subr.mxu0 0.0
        %876 = vmatpush1.msra.mxu0 0.0
        %877 = vmatprep.subr.mxu0 0.0
        %878 = vmatpush1.msra.mxu0 0.0
        %879 = vmatprep.subr.mxu0 0.0
        %880 = vmatpush1.msra.mxu0 0.0
        %881 = vmatprep.subr.mxu0 0.0
        %882 = vmatpush1.msra.mxu0 0.0
        %883 = vmatprep.subr.mxu0 0.0
        %884 = vmatpush1.msra.mxu0 0.0
        %885 = vmatprep.subr.mxu0 0.0
        %886 = vmatpush1.msra.mxu0 0.0
        %887 = vmatprep.subr.mxu0 0.0
        %888 = vmatpush1.msra.mxu0 0.0
        %889 = vmatprep.subr.mxu0 0.0
        %890 = vmatpush1.msra.mxu0 %v857
        %891 = vmatprep.subr.mxu0 0.0
        %892 = vmatpush2.msra.mxu0 0.0
        %893 = vmatprep.subr.mxu0 0.0
        %894 = vmatpush2.msra.mxu0 0.0
        %895 = vmatprep.subr.mxu0 0.0
        %896 = vmatpush2.msra.mxu0 0.0
        %897 = vmatprep.subr.mxu0 0.0
        %898 = vmatpush2.msra.mxu0 0.0
        %899 = vmatprep.subr.mxu0 0.0
        %900 = vmatpush2.msra.mxu0 0.0
        %901 = vmatprep.subr.mxu0 0.0
        %902 = vmatpush2.msra.mxu0 0.0
        %903 = vmatprep.subr.mxu0 0.0
        %904 = vmatpush2.msra.mxu0 0.0
        %905 = vmatprep.subr.mxu0 0.0
        %906 = vmatpush2.msra.mxu0 0.0
        %907 = vmatprep.subr.mxu0 0.0
        %908 = vmatpush2.msra.mxu0 0.0
        %909 = vmatprep.subr.mxu0 0.0
        %910 = vmatpush2.msra.mxu0 0.0
        %911 = vmatprep.subr.mxu0 0.0
        %912 = vmatpush2.msra.mxu0 0.0
        %913 = vmatprep.subr.mxu0 0.0
        %914 = vmatpush2.msra.mxu0 0.0
        %915 = vmatprep.subr.mxu0 0.0
        %916 = vmatpush2.msra.mxu0 0.0
        %917 = vmatprep.subr.mxu0 0.0
        %918 = vmatpush2.msra.mxu0 0.0
        %919 = vmatprep.subr.mxu0 0.0
        %920 = vmatpush2.msra.mxu0 0.0
        %921 = vmatprep.subr.mxu0 0.0
        %922 = vmatpush2.msra.mxu0 0.0
        %923 = vmatprep.mubr.f32.mxu0 0.0
        %924 = vmatmul.mubr.f32.gmra.mxu0 %v747
        %v925 = vpop.f32.mrf.mxu0
        %v926 = vadd.f32 0.0, %v925
        %v927 = vpop.f32.mrf.mxu0
        %928 = vdwg.mxu0
        %v930 = vcombine.high %v926, %v926
        %v932 = vunpack.c.l.s4 1966171168
        %v933 = vunpack.c.0.s8 %v932
        %v934 = vlaneseq
        %v935 = vshrl.u32 %v934, 7
        %v936 = vsub.s32 %v933, %v935
        %v937 = vrot.slane %v926, %v936
        %v939 = vunpack.c.l.s4 1966171168
        %v940 = vunpack.c.0.s8 %v939
        %v941 = vlaneseq
        %v942 = vshrl.u32 %v941, 7
        %v943 = vsub.s32 %v940, %v942
        %v944 = vrot.slane %v930, %v943
        %v945 = vcombine.high %v937, %v937
        %v946 = vcombine.high %v944, %v944
        %v948 = vunpack.c.l.s4 1966171168
        %v949 = vunpack.c.0.s8 %v948
        %v950 = vlaneseq
        %v951 = vshrl.u32 %v950, 7
        %v952 = vsub.s32 %v949, %v951
        %v953 = vrot.slane %v937, %v952
        %v955 = vunpack.c.l.s4 1966171168
        %v956 = vunpack.c.0.s8 %v955
        %v957 = vlaneseq
        %v958 = vshrl.u32 %v957, 7
        %v959 = vsub.s32 %v956, %v958
        %v960 = vrot.slane %v944, %v959
        %v962 = vunpack.c.l.s4 1966171168
        %v963 = vunpack.c.0.s8 %v962
        %v964 = vlaneseq
        %v965 = vshrl.u32 %v964, 7
        %v966 = vsub.s32 %v963, %v965
        %v967 = vrot.slane %v945, %v966
        %v969 = vunpack.c.l.s4 1966171168
        %v970 = vunpack.c.0.s8 %v969
        %v971 = vlaneseq
        %v972 = vshrl.u32 %v971, 7
        %v973 = vsub.s32 %v970, %v972
        %v974 = vrot.slane %v946, %v973
        %v975 = vcombine.high %v953, %v953
        %v976 = vcombine.high %v960, %v960
        %v977 = vcombine.high %v967, %v967
        %v978 = vcombine.high %v974, %v974
        %v979 = vlaneseq
        %v980 = vshrl.u32 %v979, 7
        %v981 = vsub.s32 0, %v980
        %v982 = vrot.slane %v953, %v981
        %v983 = vlaneseq
        %v984 = vshrl.u32 %v983, 7
        %v985 = vsub.s32 0, %v984
        %v986 = vrot.slane %v967, %v985
        %v987 = vlaneseq
        %v988 = vshrl.u32 %v987, 7
        %v989 = vsub.s32 0, %v988
        %v990 = vrot.slane %v975, %v989
        %v991 = vlaneseq
        %v992 = vshrl.u32 %v991, 7
        %v993 = vsub.s32 0, %v992
        %v994 = vrot.slane %v977, %v993
        %v995 = vlaneseq
        %v996 = vshrl.u32 %v995, 7
        %v997 = vsub.s32 0, %v996
        %v998 = vrot.slane %v960, %v997
        %v999 = vlaneseq
        %v1000 = vshrl.u32 %v999, 7
        %v1001 = vsub.s32 0, %v1000
        %v1002 = vrot.slane %v974, %v1001
        %v1003 = vlaneseq
        %v1004 = vshrl.u32 %v1003, 7
        %v1005 = vsub.s32 0, %v1004
        %v1006 = vrot.slane %v976, %v1005
        %v1007 = vlaneseq
        %v1008 = vshrl.u32 %v1007, 7
        %v1009 = vsub.s32 0, %v1008
        %v1010 = vrot.slane %v978, %v1009
        %1019 = vrot.lane.b32.xlu0 %v926, 96
        %v1020 = vpop.permute.xlu0 %1019
        %v1022 = vadd.f32 %v982, %v1020
        %v1023 = vadd.f32 %v986, %v1020
        %v1024 = vadd.f32 %v990, %v1020
        %v1025 = vadd.f32 %v994, %v1020
        %v1026 = vadd.f32 %v998, %v1020
        %v1027 = vadd.f32 %v1002, %v1020
        %v1028 = vadd.f32 %v1006, %v1020
        %v1029 = vadd.f32 %v1010, %v1020
        %v1030 = vlaneseq
        %v1031 = vshrl.u32 %v1030, 7
        %v1032 = vsub.s32 0, %v1031
        %v1033 = vrot.slane %v854, %v1032
        %1035 = vbcast.lane.b32.xlu0 %v1033, 256
        %v1036 = vpop.permute.xlu0 %1035
        %v1037 = vlaneseq
        %v1038 = vshrl.u32 %v1037, 7
        %v1039 = vsub.s32 1, %v1038
        %v1040 = vrot.slane %v854, %v1039
        %1042 = vbcast.lane.b32.xlu0 %v1040, 256
        %v1043 = vpop.permute.xlu0 %1042
        %v1044 = vlaneseq
        %v1045 = vshrl.u32 %v1044, 7
        %v1046 = vsub.s32 2, %v1045
        %v1047 = vrot.slane %v854, %v1046
        %1049 = vbcast.lane.b32.xlu0 %v1047, 256
        %v1050 = vpop.permute.xlu0 %1049
        %v1051 = vlaneseq
        %v1052 = vshrl.u32 %v1051, 7
        %v1053 = vsub.s32 3, %v1052
        %v1054 = vrot.slane %v854, %v1053
        %1056 = vbcast.lane.b32.xlu0 %v1054, 256
        %v1057 = vpop.permute.xlu0 %1056
        %v1058 = vlaneseq
        %v1059 = vshrl.u32 %v1058, 7
        %v1060 = vsub.s32 4, %v1059
        %v1061 = vrot.slane %v854, %v1060
        %1063 = vbcast.lane.b32.xlu0 %v1061, 256
        %v1064 = vpop.permute.xlu0 %1063
        %v1065 = vlaneseq
        %v1066 = vshrl.u32 %v1065, 7
        %v1067 = vsub.s32 5, %v1066
        %v1068 = vrot.slane %v854, %v1067
        %1070 = vbcast.lane.b32.xlu0 %v1068, 256
        %v1071 = vpop.permute.xlu0 %1070
        %v1072 = vlaneseq
        %v1073 = vshrl.u32 %v1072, 7
        %v1074 = vsub.s32 6, %v1073
        %v1075 = vrot.slane %v854, %v1074
        %1077 = vbcast.lane.b32.xlu0 %v1075, 256
        %v1078 = vpop.permute.xlu0 %1077
        %v1079 = vlaneseq
        %v1080 = vshrl.u32 %v1079, 7
        %v1081 = vsub.s32 7, %v1080
        %v1082 = vrot.slane %v854, %v1081
        %1084 = vbcast.lane.b32.xlu0 %v1082, 256
        %v1085 = vpop.permute.xlu0 %1084
        %v1087 = vlaneseq
        %v1088 = vshrl.u32 %v1087, 7
        %v1089 = vsub.s32 0, %v1088
        %v1090 = vrot.slane %v729, %v1089
        %v1092 = vmul.f32 %v1036, %v1090
        %v1093 = vmul.f32 %v1043, %v1090
        %v1094 = vmul.f32 %v1050, %v1090
        %v1095 = vmul.f32 %v1057, %v1090
        %v1096 = vmul.f32 %v1064, %v1090
        %v1097 = vmul.f32 %v1071, %v1090
        %v1098 = vmul.f32 %v1078, %v1090
        %v1099 = vmul.f32 %v1085, %v1090
        %v1100 = vadd.f32 %v1022, %v1092
        %v1101 = vadd.f32 %v1023, %v1093
        %v1102 = vadd.f32 %v1024, %v1094
        %v1103 = vadd.f32 %v1025, %v1095
        %v1104 = vadd.f32 %v1026, %v1096
        %v1105 = vadd.f32 %v1027, %v1097
        %v1106 = vadd.f32 %v1028, %v1098
        %v1107 = vadd.f32 %v1029, %v1099
        %v1109 = vlaneseq
        %v1110 = vshrl.u32 %v1109, 7
        %v1111 = vsub.s32 0, %v1110
        %v1112 = vrot.slane %v730, %v1111
        %v1114 = vadd.f32 %v1100, %v1112
        %v1115 = vadd.f32 %v1101, %v1112
        %v1116 = vadd.f32 %v1102, %v1112
        %v1117 = vadd.f32 %v1103, %v1112
        %v1118 = vadd.f32 %v1104, %v1112
        %v1119 = vadd.f32 %v1105, %v1112
        %v1120 = vadd.f32 %v1106, %v1112
        %v1121 = vadd.f32 %v1107, %v1112
        %v1122 = vmul.f32 %v1114, 0.1
        %v1123 = vmul.f32 %v1115, 0.1
        %v1124 = vmul.f32 %v1116, 0.1
        %v1125 = vmul.f32 %v1117, 0.1
        %v1126 = vmul.f32 %v1118, 0.1
        %v1127 = vmul.f32 %v1119, 0.1
        %v1128 = vmul.f32 %v1120, 0.1
        %v1129 = vmul.f32 %v1121, 0.1
        %v1130 = vmax.f32 %v1114, %v1122
        %v1131 = vmax.f32 %v1115, %v1123
        %v1132 = vmax.f32 %v1116, %v1124
        %v1133 = vmax.f32 %v1117, %v1125
        %v1134 = vmax.f32 %v1118, %v1126
        %v1135 = vmax.f32 %v1119, %v1127
        %v1136 = vmax.f32 %v1120, %v1128
        %v1137 = vmax.f32 %v1121, %v1129
        %v1139 = vlaneseq
        %v1140 = vshrl.u32 %v1139, 7
        %v1141 = vsub.s32 0, %v1140
        %v1142 = vrot.slane %v735, %v1141
        %vm1144 = vcmask 261120
        %v1146 = vsel %vm1144, %v1130, 0
        %v1149 = vsel %vm1144, %v1131, 0
        %v1152 = vsel %vm1144, %v1132, 0
        %v1155 = vsel %vm1144, %v1133, 0
        %v1158 = vsel %vm1144, %v1134, 0
        %v1161 = vsel %vm1144, %v1135, 0
        %v1164 = vsel %vm1144, %v1136, 0
        %v1167 = vsel %vm1144, %v1137, 0
        %1169 = vmatprep.subr.mxu0 0.0
        %1170 = vmatpush1.msra.mxu0 0.0
        %1171 = vmatprep.subr.mxu0 0.0
        %1172 = vmatpush1.msra.mxu0 0.0
        %1173 = vmatprep.subr.mxu0 0.0
        %1174 = vmatpush1.msra.mxu0 0.0
        %1175 = vmatprep.subr.mxu0 0.0
        %1176 = vmatpush1.msra.mxu0 0.0
        %1177 = vmatprep.subr.mxu0 0.0
        %1178 = vmatpush1.msra.mxu0 0.0
        %1179 = vmatprep.subr.mxu0 0.0
        %1180 = vmatpush1.msra.mxu0 0.0
        %1181 = vmatprep.subr.mxu0 0.0
        %1182 = vmatpush1.msra.mxu0 0.0
        %1183 = vmatprep.subr.mxu0 0.0
        %1184 = vmatpush1.msra.mxu0 0.0
        %1185 = vmatprep.subr.mxu0 0.0
        %1186 = vmatpush1.msra.mxu0 0.0
        %1187 = vmatprep.subr.mxu0 0.0
        %1188 = vmatpush1.msra.mxu0 0.0
        %1189 = vmatprep.subr.mxu0 0.0
        %1190 = vmatpush1.msra.mxu0 0.0
        %1191 = vmatprep.subr.mxu0 0.0
        %1192 = vmatpush1.msra.mxu0 0.0
        %1193 = vmatprep.subr.mxu0 0.0
        %1194 = vmatpush1.msra.mxu0 %v734
        %1195 = vmatprep.subr.mxu0 0.0
        %1196 = vmatpush1.msra.mxu0 %v733
        %1197 = vmatprep.subr.mxu0 0.0
        %1198 = vmatpush1.msra.mxu0 %v732
        %1199 = vmatprep.subr.mxu0 0.0
        %1200 = vmatpush1.msra.mxu0 %v731
        %1201 = vmatprep.subr.mxu0 0.0
        %1202 = vmatpush2.msra.mxu0 0.0
        %1203 = vmatprep.subr.mxu0 0.0
        %1204 = vmatpush2.msra.mxu0 0.0
        %1205 = vmatprep.subr.mxu0 0.0
        %1206 = vmatpush2.msra.mxu0 0.0
        %1207 = vmatprep.subr.mxu0 0.0
        %1208 = vmatpush2.msra.mxu0 0.0
        %1209 = vmatprep.subr.mxu0 0.0
        %1210 = vmatpush2.msra.mxu0 0.0
        %1211 = vmatprep.subr.mxu0 0.0
        %1212 = vmatpush2.msra.mxu0 0.0
        %1213 = vmatprep.subr.mxu0 0.0
        %1214 = vmatpush2.msra.mxu0 0.0
        %1215 = vmatprep.subr.mxu0 0.0
        %1216 = vmatpush2.msra.mxu0 0.0
        %1217 = vmatprep.subr.mxu0 0.0
        %1218 = vmatpush2.msra.mxu0 0.0
        %1219 = vmatprep.subr.mxu0 0.0
        %1220 = vmatpush2.msra.mxu0 0.0
        %1221 = vmatprep.subr.mxu0 0.0
        %1222 = vmatpush2.msra.mxu0 0.0
        %1223 = vmatprep.subr.mxu0 0.0
        %1224 = vmatpush2.msra.mxu0 0.0
        %1225 = vmatprep.subr.mxu0 0.0
        %1226 = vmatpush2.msra.mxu0 0.0
        %1227 = vmatprep.subr.mxu0 0.0
        %1228 = vmatpush2.msra.mxu0 0.0
        %1229 = vmatprep.subr.mxu0 0.0
        %1230 = vmatpush2.msra.mxu0 0.0
        %1231 = vmatprep.subr.mxu0 0.0
        %1232 = vmatpush2.msra.mxu0 0.0
        %1233 = vmatprep.mubr.f32.mxu0 0.0
        %1234 = vmatmul.mubr.f32.gmra.mxu0 %v1146
        %v1235 = vpop.f32.mrf.mxu0
        %v1236 = vadd.f32 %v1142, %v1235
        %v1237 = vpop.f32.mrf.mxu0
        %1238 = vmatprep.mubr.f32.mxu0 0.0
        %1239 = vmatmul.mubr.f32.gmra.mxu0 %v1149
        %v1240 = vpop.f32.mrf.mxu0
        %v1241 = vadd.f32 %v1142, %v1240
        %v1242 = vpop.f32.mrf.mxu0
        %1243 = vmatprep.mubr.f32.mxu0 0.0
        %1244 = vmatmul.mubr.f32.gmra.mxu0 %v1152
        %v1245 = vpop.f32.mrf.mxu0
        %v1246 = vadd.f32 %v1142, %v1245
        %v1247 = vpop.f32.mrf.mxu0
        %1248 = vmatprep.mubr.f32.mxu0 0.0
        %1249 = vmatmul.mubr.f32.gmra.mxu0 %v1155
        %v1250 = vpop.f32.mrf.mxu0
        %v1251 = vadd.f32 %v1142, %v1250
        %v1252 = vpop.f32.mrf.mxu0
        %1253 = vmatprep.mubr.f32.mxu0 0.0
        %1254 = vmatmul.mubr.f32.gmra.mxu0 %v1158
        %v1255 = vpop.f32.mrf.mxu0
        %v1256 = vadd.f32 %v1142, %v1255
        %v1257 = vpop.f32.mrf.mxu0
        %1258 = vmatprep.mubr.f32.mxu0 0.0
        %1259 = vmatmul.mubr.f32.gmra.mxu0 %v1161
        %v1260 = vpop.f32.mrf.mxu0
        %v1261 = vadd.f32 %v1142, %v1260
        %v1262 = vpop.f32.mrf.mxu0
        %1263 = vmatprep.mubr.f32.mxu0 0.0
        %1264 = vmatmul.mubr.f32.gmra.mxu0 %v1164
        %v1265 = vpop.f32.mrf.mxu0
        %v1266 = vadd.f32 %v1142, %v1265
        %v1267 = vpop.f32.mrf.mxu0
        %1268 = vmatprep.mubr.f32.mxu0 0.0
        %1269 = vmatmul.mubr.f32.gmra.mxu0 %v1167
        %v1270 = vpop.f32.mrf.mxu0
        %v1271 = vadd.f32 %v1142, %v1270
        %v1272 = vpop.f32.mrf.mxu0
        %1273 = vdwg.mxu0
        %v1274 = vmul.f32 %v1236, 0.1
        %v1275 = vmul.f32 %v1241, 0.1
        %v1276 = vmul.f32 %v1246, 0.1
        %v1277 = vmul.f32 %v1251, 0.1
        %v1278 = vmul.f32 %v1256, 0.1
        %v1279 = vmul.f32 %v1261, 0.1
        %v1280 = vmul.f32 %v1266, 0.1
        %v1281 = vmul.f32 %v1271, 0.1
        %v1282 = vmax.f32 %v1236, %v1274
        %v1283 = vmax.f32 %v1241, %v1275
        %v1284 = vmax.f32 %v1246, %v1276
        %v1285 = vmax.f32 %v1251, %v1277
        %v1286 = vmax.f32 %v1256, %v1278
        %v1287 = vmax.f32 %v1261, %v1279
        %v1288 = vmax.f32 %v1266, %v1280
        %v1289 = vmax.f32 %v1271, %v1281
        %vm1290 = vcmask 130048
        %v1291 = vsel %vm1290, %v1282, 0.0
        %v1292 = vrot.slane %v1291, 4
        %v1293 = vadd.f32 %v1291, %v1292
        %v1294 = vrot.slane %v1293, 2
        %v1295 = vadd.f32 %v1293, %v1294
        %v1296 = vrot.slane %v1295, 1
        %v1297 = vadd.f32 %v1295, %v1296
        %v1298 = vsel %vm1290, %v1283, 0.0
        %v1299 = vrot.slane %v1298, 4
        %v1300 = vadd.f32 %v1298, %v1299
        %v1301 = vrot.slane %v1300, 2
        %v1302 = vadd.f32 %v1300, %v1301
        %v1303 = vrot.slane %v1302, 1
        %v1304 = vadd.f32 %v1302, %v1303
        %v1305 = vsel %vm1290, %v1284, 0.0
        %v1306 = vrot.slane %v1305, 4
        %v1307 = vadd.f32 %v1305, %v1306
        %v1308 = vrot.slane %v1307, 2
        %v1309 = vadd.f32 %v1307, %v1308
        %v1310 = vrot.slane %v1309, 1
        %v1311 = vadd.f32 %v1309, %v1310
        %v1312 = vsel %vm1290, %v1285, 0.0
        %v1313 = vrot.slane %v1312, 4
        %v1314 = vadd.f32 %v1312, %v1313
        %v1315 = vrot.slane %v1314, 2
        %v1316 = vadd.f32 %v1314, %v1315
        %v1317 = vrot.slane %v1316, 1
        %v1318 = vadd.f32 %v1316, %v1317
        %v1319 = vsel %vm1290, %v1286, 0.0
        %v1320 = vrot.slane %v1319, 4
        %v1321 = vadd.f32 %v1319, %v1320
        %v1322 = vrot.slane %v1321, 2
        %v1323 = vadd.f32 %v1321, %v1322
        %v1324 = vrot.slane %v1323, 1
        %v1325 = vadd.f32 %v1323, %v1324
        %v1326 = vsel %vm1290, %v1287, 0.0
        %v1327 = vrot.slane %v1326, 4
        %v1328 = vadd.f32 %v1326, %v1327
        %v1329 = vrot.slane %v1328, 2
        %v1330 = vadd.f32 %v1328, %v1329
        %v1331 = vrot.slane %v1330, 1
        %v1332 = vadd.f32 %v1330, %v1331
        %v1333 = vsel %vm1290, %v1288, 0.0
        %v1334 = vrot.slane %v1333, 4
        %v1335 = vadd.f32 %v1333, %v1334
        %v1336 = vrot.slane %v1335, 2
        %v1337 = vadd.f32 %v1335, %v1336
        %v1338 = vrot.slane %v1337, 1
        %v1339 = vadd.f32 %v1337, %v1338
        %v1340 = vsel %vm1290, %v1289, 0.0
        %v1341 = vrot.slane %v1340, 4
        %v1342 = vadd.f32 %v1340, %v1341
        %v1343 = vrot.slane %v1342, 2
        %v1344 = vadd.f32 %v1342, %v1343
        %v1345 = vrot.slane %v1344, 1
        %v1346 = vadd.f32 %v1344, %v1345
        %v1355 = vsel %vm830, %v1304, %v1297
        %v1356 = vsel %vm831, %v1311, %v1355
        %v1357 = vsel %vm833, %v1318, %v1356
        %v1358 = vsel %vm835, %v1325, %v1357
        %v1359 = vsel %vm837, %v1332, %v1358
        %v1360 = vsel %vm839, %v1339, %v1359
        %v1361 = vsel %vm841, %v1346, %v1360
        %1362 = vrot.lane.b32.xlu0 %v1361, 4
        %v1363 = vpop.permute.xlu0 %1362
        %v1365 = vsel %vm745, %v727, %v1363
        %v1367 = vlaneseq
        %v1368 = vshrl.u32 %v1367, 7
        %v1369 = vsub.s32 0, %v1368
        %v1370 = vrot.slane %v739, %v1369
        %vm1372 = vcmask 162816
        %v1374 = vsel %vm1372, %v1365, 0
        %v1377 = vsel %vm855, %v738, 0
        %1379 = vmatprep.subr.mxu0 0.0
        %1380 = vmatpush1.msra.mxu0 0.0
        %1381 = vmatprep.subr.mxu0 0.0
        %1382 = vmatpush1.msra.mxu0 0.0
        %1383 = vmatprep.subr.mxu0 0.0
        %1384 = vmatpush1.msra.mxu0 0.0
        %1385 = vmatprep.subr.mxu0 0.0
        %1386 = vmatpush1.msra.mxu0 0.0
        %1387 = vmatprep.subr.mxu0 0.0
        %1388 = vmatpush1.msra.mxu0 0.0
        %1389 = vmatprep.subr.mxu0 0.0
        %1390 = vmatpush1.msra.mxu0 0.0
        %1391 = vmatprep.subr.mxu0 0.0
        %1392 = vmatpush1.msra.mxu0 0.0
        %1393 = vmatprep.subr.mxu0 0.0
        %1394 = vmatpush1.msra.mxu0 0.0
        %1395 = vmatprep.subr.mxu0 0.0
        %1396 = vmatpush1.msra.mxu0 0.0
        %1397 = vmatprep.subr.mxu0 0.0
        %1398 = vmatpush1.msra.mxu0 0.0
        %1399 = vmatprep.subr.mxu0 0.0
        %1400 = vmatpush1.msra.mxu0 0.0
        %1401 = vmatprep.subr.mxu0 0.0
        %1402 = vmatpush1.msra.mxu0 0.0
        %1403 = vmatprep.subr.mxu0 0.0
        %1404 = vmatpush1.msra.mxu0 0.0
        %1405 = vmatprep.subr.mxu0 0.0
        %1406 = vmatpush1.msra.mxu0 %v1377
        %1407 = vmatprep.subr.mxu0 0.0
        %1408 = vmatpush1.msra.mxu0 %v737
        %1409 = vmatprep.subr.mxu0 0.0
        %1410 = vmatpush1.msra.mxu0 %v736
        %1411 = vmatprep.subr.mxu0 0.0
        %1412 = vmatpush2.msra.mxu0 0.0
        %1413 = vmatprep.subr.mxu0 0.0
        %1414 = vmatpush2.msra.mxu0 0.0
        %1415 = vmatprep.subr.mxu0 0.0
        %1416 = vmatpush2.msra.mxu0 0.0
        %1417 = vmatprep.subr.mxu0 0.0
        %1418 = vmatpush2.msra.mxu0 0.0
        %1419 = vmatprep.subr.mxu0 0.0
        %1420 = vmatpush2.msra.mxu0 0.0
        %1421 = vmatprep.subr.mxu0 0.0
        %1422 = vmatpush2.msra.mxu0 0.0
        %1423 = vmatprep.subr.mxu0 0.0
        %1424 = vmatpush2.msra.mxu0 0.0
        %1425 = vmatprep.subr.mxu0 0.0
        %1426 = vmatpush2.msra.mxu0 0.0
        %1427 = vmatprep.subr.mxu0 0.0
        %1428 = vmatpush2.msra.mxu0 0.0
        %1429 = vmatprep.subr.mxu0 0.0
        %1430 = vmatpush2.msra.mxu0 0.0
        %1431 = vmatprep.subr.mxu0 0.0
        %1432 = vmatpush2.msra.mxu0 0.0
        %1433 = vmatprep.subr.mxu0 0.0
        %1434 = vmatpush2.msra.mxu0 0.0
        %1435 = vmatprep.subr.mxu0 0.0
        %1436 = vmatpush2.msra.mxu0 0.0
        %1437 = vmatprep.subr.mxu0 0.0
        %1438 = vmatpush2.msra.mxu0 0.0
        %1439 = vmatprep.subr.mxu0 0.0
        %1440 = vmatpush2.msra.mxu0 0.0
        %1441 = vmatprep.subr.mxu0 0.0
        %1442 = vmatpush2.msra.mxu0 0.0
        %1443 = vmatprep.mubr.f32.mxu0 0.0
        %1444 = vmatmul.mubr.f32.gmra.mxu0 %v1374
        %v1445 = vpop.f32.mrf.mxu0
        %v1446 = vadd.f32 %v1370, %v1445
        %v1447 = vpop.f32.mrf.mxu0
        %1448 = vdwg.mxu0
        %v1449 = vmul.f32 %v1446, 0.1
        %v1450 = vmax.f32 %v1446, %v1449
        %v1452 = vlaneseq
        %v1453 = vshrl.u32 %v1452, 7
        %v1454 = vsub.s32 0, %v1453
        %v1455 = vrot.slane %v744, %v1454
        %v1458 = vsel %vm1144, %v1450, 0
        %1460 = vmatprep.subr.mxu0 0.0
        %1461 = vmatpush1.msra.mxu0 0.0
        %1462 = vmatprep.subr.mxu0 0.0
        %1463 = vmatpush1.msra.mxu0 0.0
        %1464 = vmatprep.subr.mxu0 0.0
        %1465 = vmatpush1.msra.mxu0 0.0
        %1466 = vmatprep.subr.mxu0 0.0
        %1467 = vmatpush1.msra.mxu0 0.0
        %1468 = vmatprep.subr.mxu0 0.0
        %1469 = vmatpush1.msra.mxu0 0.0
        %1470 = vmatprep.subr.mxu0 0.0
        %1471 = vmatpush1.msra.mxu0 0.0
        %1472 = vmatprep.subr.mxu0 0.0
        %1473 = vmatpush1.msra.mxu0 0.0
        %1474 = vmatprep.subr.mxu0 0.0
        %1475 = vmatpush1.msra.mxu0 0.0
        %1476 = vmatprep.subr.mxu0 0.0
        %1477 = vmatpush1.msra.mxu0 0.0
        %1478 = vmatprep.subr.mxu0 0.0
        %1479 = vmatpush1.msra.mxu0 0.0
        %1480 = vmatprep.subr.mxu0 0.0
        %1481 = vmatpush1.msra.mxu0 0.0
        %1482 = vmatprep.subr.mxu0 0.0
        %1483 = vmatpush1.msra.mxu0 0.0
        %1484 = vmatprep.subr.mxu0 0.0
        %1485 = vmatpush1.msra.mxu0 %v743
        %1486 = vmatprep.subr.mxu0 0.0
        %1487 = vmatpush1.msra.mxu0 %v742
        %1488 = vmatprep.subr.mxu0 0.0
        %1489 = vmatpush1.msra.mxu0 %v741
        %1490 = vmatprep.subr.mxu0 0.0
        %1491 = vmatpush1.msra.mxu0 %v740
        %1492 = vmatprep.subr.mxu0 0.0
        %1493 = vmatpush2.msra.mxu0 0.0
        %1494 = vmatprep.subr.mxu0 0.0
        %1495 = vmatpush2.msra.mxu0 0.0
        %1496 = vmatprep.subr.mxu0 0.0
        %1497 = vmatpush2.msra.mxu0 0.0
        %1498 = vmatprep.subr.mxu0 0.0
        %1499 = vmatpush2.msra.mxu0 0.0
        %1500 = vmatprep.subr.mxu0 0.0
        %1501 = vmatpush2.msra.mxu0 0.0
        %1502 = vmatprep.subr.mxu0 0.0
        %1503 = vmatpush2.msra.mxu0 0.0
        %1504 = vmatprep.subr.mxu0 0.0
        %1505 = vmatpush2.msra.mxu0 0.0
        %1506 = vmatprep.subr.mxu0 0.0
        %1507 = vmatpush2.msra.mxu0 0.0
        %1508 = vmatprep.subr.mxu0 0.0
        %1509 = vmatpush2.msra.mxu0 0.0
        %1510 = vmatprep.subr.mxu0 0.0
        %1511 = vmatpush2.msra.mxu0 0.0
        %1512 = vmatprep.subr.mxu0 0.0
        %1513 = vmatpush2.msra.mxu0 0.0
        %1514 = vmatprep.subr.mxu0 0.0
        %1515 = vmatpush2.msra.mxu0 0.0
        %1516 = vmatprep.subr.mxu0 0.0
        %1517 = vmatpush2.msra.mxu0 0.0
        %1518 = vmatprep.subr.mxu0 0.0
        %1519 = vmatpush2.msra.mxu0 0.0
        %1520 = vmatprep.subr.mxu0 0.0
        %1521 = vmatpush2.msra.mxu0 0.0
        %1522 = vmatprep.subr.mxu0 0.0
        %1523 = vmatpush2.msra.mxu0 0.0
        %1524 = vmatprep.mubr.f32.mxu0 0.0
        %1525 = vmatmul.mubr.f32.gmra.mxu0 %v1458
        %v1526 = vpop.f32.mrf.mxu0
        %v1527 = vadd.f32 %v1455, %v1526
        %v1528 = vpop.f32.mrf.mxu0
        %1529 = vdwg.mxu0
        %v1530 = vmul.f32 %v1527, 0.1
        %v1531 = vmax.f32 %v1527, %v1530
        %v1532 = vld [vmem:[%s10] sm:$0xff]
        %v1533 = vld [vmem:[%s10 + $0x8] sm:$0xff]
        %v1534 = vld [vmem:[%s10 + $0x10] sm:$0xff]
        %v1535 = vld [vmem:[%s10 + $0x18] sm:$0xff]
        %v1536 = vld [vmem:[%s11] sm:$0x1]
        %v1537 = vld [vmem:[%s12] sm:$0x1]
        %v1538 = vld [vmem:[%s13] sm:$0xff]
        %v1539 = vld [vmem:[%s13 + $0x8] sm:$0xff]
        %v1540 = vld [vmem:[%s13 + $0x10] sm:$0xff]
        %v1541 = vld [vmem:[%s13 + $0x18] sm:$0xff]
        %v1542 = vld [vmem:[%s14] sm:$0x1]
        %v1543 = vld [vmem:[%s15] sm:$0xff]
        %v1544 = vld [vmem:[%s15 + $0x8] sm:$0xff]
        %v1545 = vld [vmem:[%s15 + $0x10] sm:$0xff]
        %v1546 = vld [vmem:[%s15 + $0x18] sm:$0xff]
        %v1547 = vld [vmem:[%s15 + $0x20] sm:$0xff]
        %v1548 = vld [vmem:[%s15 + $0x28] sm:$0xff]
        %v1549 = vld [vmem:[%s16] sm:$0x1]
        %v1550 = vld [vmem:[%s17] sm:$0xff]
        %v1551 = vld [vmem:[%s17 + $0x8] sm:$0xff]
        %v1552 = vld [vmem:[%s17 + $0x10] sm:$0xff]
        %v1553 = vld [vmem:[%s17 + $0x18] sm:$0xff]
        %v1554 = vld [vmem:[%s18] sm:$0x1]
        %v1556 = vsel %vm1144, %v1531, 0
        %1558 = vmatprep.subr.mxu0 0.0
        %1559 = vmatpush1.xpose.msra.mxu0 0.0
        %1560 = vmatprep.subr.mxu0 0.0
        %1561 = vmatpush1.xpose.msra.mxu0 0.0
        %1562 = vmatprep.subr.mxu0 0.0
        %1563 = vmatpush1.xpose.msra.mxu0 0.0
        %1564 = vmatprep.subr.mxu0 0.0
        %1565 = vmatpush1.xpose.msra.mxu0 0.0
        %1566 = vmatprep.subr.mxu0 0.0
        %1567 = vmatpush1.xpose.msra.mxu0 0.0
        %1568 = vmatprep.subr.mxu0 0.0
        %1569 = vmatpush1.xpose.msra.mxu0 0.0
        %1570 = vmatprep.subr.mxu0 0.0
        %1571 = vmatpush1.xpose.msra.mxu0 0.0
        %1572 = vmatprep.subr.mxu0 0.0
        %1573 = vmatpush1.xpose.msra.mxu0 0.0
        %1574 = vmatprep.subr.mxu0 0.0
        %1575 = vmatpush1.xpose.msra.mxu0 0.0
        %1576 = vmatprep.subr.mxu0 0.0
        %1577 = vmatpush1.xpose.msra.mxu0 0.0
        %1578 = vmatprep.subr.mxu0 0.0
        %1579 = vmatpush1.xpose.msra.mxu0 0.0
        %1580 = vmatprep.subr.mxu0 0.0
        %1581 = vmatpush1.xpose.msra.mxu0 0.0
        %1582 = vmatprep.subr.mxu0 0.0
        %1583 = vmatpush1.xpose.msra.mxu0 0.0
        %1584 = vmatprep.subr.mxu0 0.0
        %1585 = vmatpush1.xpose.msra.mxu0 0.0
        %1586 = vmatprep.subr.mxu0 0.0
        %1587 = vmatpush1.xpose.msra.mxu0 0.0
        %1588 = vmatprep.subr.mxu0 0.0
        %1589 = vmatpush1.xpose.msra.mxu0 %v1556
        %1590 = vmatprep.subr.mxu0 0.0
        %1591 = vmatpush2.xpose.msra.mxu0 0.0
        %1592 = vmatprep.subr.mxu0 0.0
        %1593 = vmatpush2.xpose.msra.mxu0 0.0
        %1594 = vmatprep.subr.mxu0 0.0
        %1595 = vmatpush2.xpose.msra.mxu0 0.0
        %1596 = vmatprep.subr.mxu0 0.0
        %1597 = vmatpush2.xpose.msra.mxu0 0.0
        %1598 = vmatprep.subr.mxu0 0.0
        %1599 = vmatpush2.xpose.msra.mxu0 0.0
        %1600 = vmatprep.subr.mxu0 0.0
        %1601 = vmatpush2.xpose.msra.mxu0 0.0
        %1602 = vmatprep.subr.mxu0 0.0
        %1603 = vmatpush2.xpose.msra.mxu0 0.0
        %1604 = vmatprep.subr.mxu0 0.0
        %1605 = vmatpush2.xpose.msra.mxu0 0.0
        %1606 = vmatprep.subr.mxu0 0.0
        %1607 = vmatpush2.xpose.msra.mxu0 0.0
        %1608 = vmatprep.subr.mxu0 0.0
        %1609 = vmatpush2.xpose.msra.mxu0 0.0
        %1610 = vmatprep.subr.mxu0 0.0
        %1611 = vmatpush2.xpose.msra.mxu0 0.0
        %1612 = vmatprep.subr.mxu0 0.0
        %1613 = vmatpush2.xpose.msra.mxu0 0.0
        %1614 = vmatprep.subr.mxu0 0.0
        %1615 = vmatpush2.xpose.msra.mxu0 0.0
        %1616 = vmatprep.subr.mxu0 0.0
        %1617 = vmatpush2.xpose.msra.mxu0 0.0
        %1618 = vmatprep.subr.mxu0 0.0
        %1619 = vmatpush2.xpose.msra.mxu0 0.0
        %1620 = vmatprep.subr.mxu0 0.0
        %1621 = vmatpush2.xpose.msra.mxu0 0.0
        %1622 = vmatprep.mubr.f32.mxu0 0.0
        %1623 = vmatmul.mubr.f32.gmra.mxu0 %v1556
        %v1624 = vpop.f32.mrf.mxu0
        %v1625 = vadd.f32 0.0, %v1624
        %v1626 = vpop.f32.mrf.mxu0
        %1627 = vdwg.mxu0
        %v1628 = vmul.f32 %v1531, %v1531
        %v1629 = vsel %vm1144, %v1628, 0.0
        %1630 = vadd.xlane.f32.xlu0 %v1629
        %v1631 = vpop.xlane.xlu0 %1630
        %v1633 = vlaneseq
        %v1634 = vshrl.u32 %v1633, 7
        %v1635 = vsub.s32 %v825, %v1634
        %v1636 = vrot.slane %v1631, %v1635
        %v1637 = vsel %vm831, %v1636, %v1636
        %v1638 = vsel %vm833, %v1636, %v1637
        %v1639 = vsel %vm835, %v1636, %v1638
        %v1640 = vsel %vm837, %v1636, %v1639
        %v1641 = vsel %vm839, %v1636, %v1640
        %v1642 = vsel %vm841, %v1636, %v1641
        %v1644 = vadd.f32 %v1631, %v1642
        %v1645 = vmul.f32 %v1625, 2.0
        %v1646 = vsub.f32 %v1644, %v1645
        %v1647 = vmax.f32 %v1646, 0.0
        %v1648 = vrsqrt.pop %v1647
        %v1649 = vmul.f32 %v1647, %v1648
        %vm1650 = vcmp.eq.f32.partialorder %v1647, inf
        %v1651 = vsel %vm1650, %v1647, %v1649
        %vm1652 = vcmp.eq.f32.partialorder %v1647, 0.0
        %v1653 = vand.u32 %v1647, 2147483648
        %v1654 = vsel %vm1652, %v1653, %v1651
        %1655 = vmatprep.subr.mxu0 0.0
        %1656 = vmatpush1.msra.mxu0 0.0
        %1657 = vmatprep.subr.mxu0 0.0
        %1658 = vmatpush1.msra.mxu0 0.0
        %1659 = vmatprep.subr.mxu0 0.0
        %1660 = vmatpush1.msra.mxu0 0.0
        %1661 = vmatprep.subr.mxu0 0.0
        %1662 = vmatpush1.msra.mxu0 0.0
        %1663 = vmatprep.subr.mxu0 0.0
        %1664 = vmatpush1.msra.mxu0 0.0
        %1665 = vmatprep.subr.mxu0 0.0
        %1666 = vmatpush1.msra.mxu0 0.0
        %1667 = vmatprep.subr.mxu0 0.0
        %1668 = vmatpush1.msra.mxu0 0.0
        %1669 = vmatprep.subr.mxu0 0.0
        %1670 = vmatpush1.msra.mxu0 0.0
        %1671 = vmatprep.subr.mxu0 0.0
        %1672 = vmatpush1.msra.mxu0 0.0
        %1673 = vmatprep.subr.mxu0 0.0
        %1674 = vmatpush1.msra.mxu0 0.0
        %1675 = vmatprep.subr.mxu0 0.0
        %1676 = vmatpush1.msra.mxu0 0.0
        %1677 = vmatprep.subr.mxu0 0.0
        %1678 = vmatpush1.msra.mxu0 0.0
        %1679 = vmatprep.subr.mxu0 0.0
        %1680 = vmatpush1.msra.mxu0 %v1535
        %1681 = vmatprep.subr.mxu0 0.0
        %1682 = vmatpush1.msra.mxu0 %v1534
        %1683 = vmatprep.subr.mxu0 0.0
        %1684 = vmatpush1.msra.mxu0 %v1533
        %1685 = vmatprep.subr.mxu0 0.0
        %1686 = vmatpush1.msra.mxu0 %v1532
        %1687 = vmatprep.subr.mxu0 0.0
        %1688 = vmatpush2.msra.mxu0 0.0
        %1689 = vmatprep.subr.mxu0 0.0
        %1690 = vmatpush2.msra.mxu0 0.0
        %1691 = vmatprep.subr.mxu0 0.0
        %1692 = vmatpush2.msra.mxu0 0.0
        %1693 = vmatprep.subr.mxu0 0.0
        %1694 = vmatpush2.msra.mxu0 0.0
        %1695 = vmatprep.subr.mxu0 0.0
        %1696 = vmatpush2.msra.mxu0 0.0
        %1697 = vmatprep.subr.mxu0 0.0
        %1698 = vmatpush2.msra.mxu0 0.0
        %1699 = vmatprep.subr.mxu0 0.0
        %1700 = vmatpush2.msra.mxu0 0.0
        %1701 = vmatprep.subr.mxu0 0.0
        %1702 = vmatpush2.msra.mxu0 0.0
        %1703 = vmatprep.subr.mxu0 0.0
        %1704 = vmatpush2.msra.mxu0 0.0
        %1705 = vmatprep.subr.mxu0 0.0
        %1706 = vmatpush2.msra.mxu0 0.0
        %1707 = vmatprep.subr.mxu0 0.0
        %1708 = vmatpush2.msra.mxu0 0.0
        %1709 = vmatprep.subr.mxu0 0.0
        %1710 = vmatpush2.msra.mxu0 0.0
        %1711 = vmatprep.subr.mxu0 0.0
        %1712 = vmatpush2.msra.mxu0 0.0
        %1713 = vmatprep.subr.mxu0 0.0
        %1714 = vmatpush2.msra.mxu0 0.0
        %1715 = vmatprep.subr.mxu0 0.0
        %1716 = vmatpush2.msra.mxu0 0.0
        %1717 = vmatprep.subr.mxu0 0.0
        %1718 = vmatpush2.msra.mxu0 0.0
        %1719 = vmatprep.mubr.f32.mxu0 0.0
        %1720 = vmatmul.mubr.f32.gmra.mxu0 %v1556
        %v1721 = vpop.f32.mrf.mxu0
        %v1722 = vadd.f32 0.0, %v1721
        %v1723 = vpop.f32.mrf.mxu0
        %1724 = vdwg.mxu0
        %v1726 = vcombine.high %v1722, %v1722
        %v1728 = vunpack.c.l.s4 1966171168
        %v1729 = vunpack.c.0.s8 %v1728
        %v1730 = vlaneseq
        %v1731 = vshrl.u32 %v1730, 7
        %v1732 = vsub.s32 %v1729, %v1731
        %v1733 = vrot.slane %v1722, %v1732
        %v1735 = vunpack.c.l.s4 1966171168
        %v1736 = vunpack.c.0.s8 %v1735
        %v1737 = vlaneseq
        %v1738 = vshrl.u32 %v1737, 7
        %v1739 = vsub.s32 %v1736, %v1738
        %v1740 = vrot.slane %v1726, %v1739
        %v1741 = vcombine.high %v1733, %v1733
        %v1742 = vcombine.high %v1740, %v1740
        %v1744 = vunpack.c.l.s4 1966171168
        %v1745 = vunpack.c.0.s8 %v1744
        %v1746 = vlaneseq
        %v1747 = vshrl.u32 %v1746, 7
        %v1748 = vsub.s32 %v1745, %v1747
        %v1749 = vrot.slane %v1733, %v1748
        %v1751 = vunpack.c.l.s4 1966171168
        %v1752 = vunpack.c.0.s8 %v1751
        %v1753 = vlaneseq
        %v1754 = vshrl.u32 %v1753, 7
        %v1755 = vsub.s32 %v1752, %v1754
        %v1756 = vrot.slane %v1740, %v1755
        %v1758 = vunpack.c.l.s4 1966171168
        %v1759 = vunpack.c.0.s8 %v1758
        %v1760 = vlaneseq
        %v1761 = vshrl.u32 %v1760, 7
        %v1762 = vsub.s32 %v1759, %v1761
        %v1763 = vrot.slane %v1741, %v1762
        %v1765 = vunpack.c.l.s4 1966171168
        %v1766 = vunpack.c.0.s8 %v1765
        %v1767 = vlaneseq
        %v1768 = vshrl.u32 %v1767, 7
        %v1769 = vsub.s32 %v1766, %v1768
        %v1770 = vrot.slane %v1742, %v1769
        %v1771 = vcombine.high %v1749, %v1749
        %v1772 = vcombine.high %v1756, %v1756
        %v1773 = vcombine.high %v1763, %v1763
        %v1774 = vcombine.high %v1770, %v1770
        %v1775 = vlaneseq
        %v1776 = vshrl.u32 %v1775, 7
        %v1777 = vsub.s32 0, %v1776
        %v1778 = vrot.slane %v1749, %v1777
        %v1779 = vlaneseq
        %v1780 = vshrl.u32 %v1779, 7
        %v1781 = vsub.s32 0, %v1780
        %v1782 = vrot.slane %v1763, %v1781
        %v1783 = vlaneseq
        %v1784 = vshrl.u32 %v1783, 7
        %v1785 = vsub.s32 0, %v1784
        %v1786 = vrot.slane %v1771, %v1785
        %v1787 = vlaneseq
        %v1788 = vshrl.u32 %v1787, 7
        %v1789 = vsub.s32 0, %v1788
        %v1790 = vrot.slane %v1773, %v1789
        %v1791 = vlaneseq
        %v1792 = vshrl.u32 %v1791, 7
        %v1793 = vsub.s32 0, %v1792
        %v1794 = vrot.slane %v1756, %v1793
        %v1795 = vlaneseq
        %v1796 = vshrl.u32 %v1795, 7
        %v1797 = vsub.s32 0, %v1796
        %v1798 = vrot.slane %v1770, %v1797
        %v1799 = vlaneseq
        %v1800 = vshrl.u32 %v1799, 7
        %v1801 = vsub.s32 0, %v1800
        %v1802 = vrot.slane %v1772, %v1801
        %v1803 = vlaneseq
        %v1804 = vshrl.u32 %v1803, 7
        %v1805 = vsub.s32 0, %v1804
        %v1806 = vrot.slane %v1774, %v1805
        %1815 = vrot.lane.b32.xlu0 %v1722, 96
        %v1816 = vpop.permute.xlu0 %1815
        %v1818 = vadd.f32 %v1778, %v1816
        %v1819 = vadd.f32 %v1782, %v1816
        %v1820 = vadd.f32 %v1786, %v1816
        %v1821 = vadd.f32 %v1790, %v1816
        %v1822 = vadd.f32 %v1794, %v1816
        %v1823 = vadd.f32 %v1798, %v1816
        %v1824 = vadd.f32 %v1802, %v1816
        %v1825 = vadd.f32 %v1806, %v1816
        %v1826 = vlaneseq
        %v1827 = vshrl.u32 %v1826, 7
        %v1828 = vsub.s32 0, %v1827
        %v1829 = vrot.slane %v1654, %v1828
        %1831 = vbcast.lane.b32.xlu0 %v1829, 256
        %v1832 = vpop.permute.xlu0 %1831
        %v1833 = vlaneseq
        %v1834 = vshrl.u32 %v1833, 7
        %v1835 = vsub.s32 1, %v1834
        %v1836 = vrot.slane %v1654, %v1835
        %1838 = vbcast.lane.b32.xlu0 %v1836, 256
        %v1839 = vpop.permute.xlu0 %1838
        %v1840 = vlaneseq
        %v1841 = vshrl.u32 %v1840, 7
        %v1842 = vsub.s32 2, %v1841
        %v1843 = vrot.slane %v1654, %v1842
        %1845 = vbcast.lane.b32.xlu0 %v1843, 256
        %v1846 = vpop.permute.xlu0 %1845
        %v1847 = vlaneseq
        %v1848 = vshrl.u32 %v1847, 7
        %v1849 = vsub.s32 3, %v1848
        %v1850 = vrot.slane %v1654, %v1849
        %1852 = vbcast.lane.b32.xlu0 %v1850, 256
        %v1853 = vpop.permute.xlu0 %1852
        %v1854 = vlaneseq
        %v1855 = vshrl.u32 %v1854, 7
        %v1856 = vsub.s32 4, %v1855
        %v1857 = vrot.slane %v1654, %v1856
        %1859 = vbcast.lane.b32.xlu0 %v1857, 256
        %v1860 = vpop.permute.xlu0 %1859
        %v1861 = vlaneseq
        %v1862 = vshrl.u32 %v1861, 7
        %v1863 = vsub.s32 5, %v1862
        %v1864 = vrot.slane %v1654, %v1863
        %1866 = vbcast.lane.b32.xlu0 %v1864, 256
        %v1867 = vpop.permute.xlu0 %1866
        %v1868 = vlaneseq
        %v1869 = vshrl.u32 %v1868, 7
        %v1870 = vsub.s32 6, %v1869
        %v1871 = vrot.slane %v1654, %v1870
        %1873 = vbcast.lane.b32.xlu0 %v1871, 256
        %v1874 = vpop.permute.xlu0 %1873
        %v1875 = vlaneseq
        %v1876 = vshrl.u32 %v1875, 7
        %v1877 = vsub.s32 7, %v1876
        %v1878 = vrot.slane %v1654, %v1877
        %1880 = vbcast.lane.b32.xlu0 %v1878, 256
        %v1881 = vpop.permute.xlu0 %1880
        %v1883 = vlaneseq
        %v1884 = vshrl.u32 %v1883, 7
        %v1885 = vsub.s32 0, %v1884
        %v1886 = vrot.slane %v1536, %v1885
        %v1888 = vmul.f32 %v1832, %v1886
        %v1889 = vmul.f32 %v1839, %v1886
        %v1890 = vmul.f32 %v1846, %v1886
        %v1891 = vmul.f32 %v1853, %v1886
        %v1892 = vmul.f32 %v1860, %v1886
        %v1893 = vmul.f32 %v1867, %v1886
        %v1894 = vmul.f32 %v1874, %v1886
        %v1895 = vmul.f32 %v1881, %v1886
        %v1896 = vadd.f32 %v1818, %v1888
        %v1897 = vadd.f32 %v1819, %v1889
        %v1898 = vadd.f32 %v1820, %v1890
        %v1899 = vadd.f32 %v1821, %v1891
        %v1900 = vadd.f32 %v1822, %v1892
        %v1901 = vadd.f32 %v1823, %v1893
        %v1902 = vadd.f32 %v1824, %v1894
        %v1903 = vadd.f32 %v1825, %v1895
        %v1905 = vlaneseq
        %v1906 = vshrl.u32 %v1905, 7
        %v1907 = vsub.s32 0, %v1906
        %v1908 = vrot.slane %v1537, %v1907
        %v1910 = vadd.f32 %v1896, %v1908
        %v1911 = vadd.f32 %v1897, %v1908
        %v1912 = vadd.f32 %v1898, %v1908
        %v1913 = vadd.f32 %v1899, %v1908
        %v1914 = vadd.f32 %v1900, %v1908
        %v1915 = vadd.f32 %v1901, %v1908
        %v1916 = vadd.f32 %v1902, %v1908
        %v1917 = vadd.f32 %v1903, %v1908
        %v1918 = vmul.f32 %v1910, 0.12
        %v1919 = vmul.f32 %v1911, 0.12
        %v1920 = vmul.f32 %v1912, 0.12
        %v1921 = vmul.f32 %v1913, 0.12
        %v1922 = vmul.f32 %v1914, 0.12
        %v1923 = vmul.f32 %v1915, 0.12
        %v1924 = vmul.f32 %v1916, 0.12
        %v1925 = vmul.f32 %v1917, 0.12
        %v1926 = vmax.f32 %v1910, %v1918
        %v1927 = vmax.f32 %v1911, %v1919
        %v1928 = vmax.f32 %v1912, %v1920
        %v1929 = vmax.f32 %v1913, %v1921
        %v1930 = vmax.f32 %v1914, %v1922
        %v1931 = vmax.f32 %v1915, %v1923
        %v1932 = vmax.f32 %v1916, %v1924
        %v1933 = vmax.f32 %v1917, %v1925
        %v1935 = vlaneseq
        %v1936 = vshrl.u32 %v1935, 7
        %v1937 = vsub.s32 0, %v1936
        %v1938 = vrot.slane %v1542, %v1937
        %v1941 = vsel %vm1144, %v1926, 0
        %v1944 = vsel %vm1144, %v1927, 0
        %v1947 = vsel %vm1144, %v1928, 0
        %v1950 = vsel %vm1144, %v1929, 0
        %v1953 = vsel %vm1144, %v1930, 0
        %v1956 = vsel %vm1144, %v1931, 0
        %v1959 = vsel %vm1144, %v1932, 0
        %v1962 = vsel %vm1144, %v1933, 0
        %1964 = vmatprep.subr.mxu0 0.0
        %1965 = vmatpush1.msra.mxu0 0.0
        %1966 = vmatprep.subr.mxu0 0.0
        %1967 = vmatpush1.msra.mxu0 0.0
        %1968 = vmatprep.subr.mxu0 0.0
        %1969 = vmatpush1.msra.mxu0 0.0
        %1970 = vmatprep.subr.mxu0 0.0
        %1971 = vmatpush1.msra.mxu0 0.0
        %1972 = vmatprep.subr.mxu0 0.0
        %1973 = vmatpush1.msra.mxu0 0.0
        %1974 = vmatprep.subr.mxu0 0.0
        %1975 = vmatpush1.msra.mxu0 0.0
        %1976 = vmatprep.subr.mxu0 0.0
        %1977 = vmatpush1.msra.mxu0 0.0
        %1978 = vmatprep.subr.mxu0 0.0
        %1979 = vmatpush1.msra.mxu0 0.0
        %1980 = vmatprep.subr.mxu0 0.0
        %1981 = vmatpush1.msra.mxu0 0.0
        %1982 = vmatprep.subr.mxu0 0.0
        %1983 = vmatpush1.msra.mxu0 0.0
        %1984 = vmatprep.subr.mxu0 0.0
        %1985 = vmatpush1.msra.mxu0 0.0
        %1986 = vmatprep.subr.mxu0 0.0
        %1987 = vmatpush1.msra.mxu0 0.0
        %1988 = vmatprep.subr.mxu0 0.0
        %1989 = vmatpush1.msra.mxu0 %v1541
        %1990 = vmatprep.subr.mxu0 0.0
        %1991 = vmatpush1.msra.mxu0 %v1540
        %1992 = vmatprep.subr.mxu0 0.0
        %1993 = vmatpush1.msra.mxu0 %v1539
        %1994 = vmatprep.subr.mxu0 0.0
        %1995 = vmatpush1.msra.mxu0 %v1538
        %1996 = vmatprep.subr.mxu0 0.0
        %1997 = vmatpush2.msra.mxu0 0.0
        %1998 = vmatprep.subr.mxu0 0.0
        %1999 = vmatpush2.msra.mxu0 0.0
        %2000 = vmatprep.subr.mxu0 0.0
        %2001 = vmatpush2.msra.mxu0 0.0
        %2002 = vmatprep.subr.mxu0 0.0
        %2003 = vmatpush2.msra.mxu0 0.0
        %2004 = vmatprep.subr.mxu0 0.0
        %2005 = vmatpush2.msra.mxu0 0.0
        %2006 = vmatprep.subr.mxu0 0.0
        %2007 = vmatpush2.msra.mxu0 0.0
        %2008 = vmatprep.subr.mxu0 0.0
        %2009 = vmatpush2.msra.mxu0 0.0
        %2010 = vmatprep.subr.mxu0 0.0
        %2011 = vmatpush2.msra.mxu0 0.0
        %2012 = vmatprep.subr.mxu0 0.0
        %2013 = vmatpush2.msra.mxu0 0.0
        %2014 = vmatprep.subr.mxu0 0.0
        %2015 = vmatpush2.msra.mxu0 0.0
        %2016 = vmatprep.subr.mxu0 0.0
        %2017 = vmatpush2.msra.mxu0 0.0
        %2018 = vmatprep.subr.mxu0 0.0
        %2019 = vmatpush2.msra.mxu0 0.0
        %2020 = vmatprep.subr.mxu0 0.0
        %2021 = vmatpush2.msra.mxu0 0.0
        %2022 = vmatprep.subr.mxu0 0.0
        %2023 = vmatpush2.msra.mxu0 0.0
        %2024 = vmatprep.subr.mxu0 0.0
        %2025 = vmatpush2.msra.mxu0 0.0
        %2026 = vmatprep.subr.mxu0 0.0
        %2027 = vmatpush2.msra.mxu0 0.0
        %2028 = vmatprep.mubr.f32.mxu0 0.0
        %2029 = vmatmul.mubr.f32.gmra.mxu0 %v1941
        %v2030 = vpop.f32.mrf.mxu0
        %v2031 = vadd.f32 %v1938, %v2030
        %v2032 = vpop.f32.mrf.mxu0
        %2033 = vmatprep.mubr.f32.mxu0 0.0
        %2034 = vmatmul.mubr.f32.gmra.mxu0 %v1944
        %v2035 = vpop.f32.mrf.mxu0
        %v2036 = vadd.f32 %v1938, %v2035
        %v2037 = vpop.f32.mrf.mxu0
        %2038 = vmatprep.mubr.f32.mxu0 0.0
        %2039 = vmatmul.mubr.f32.gmra.mxu0 %v1947
        %v2040 = vpop.f32.mrf.mxu0
        %v2041 = vadd.f32 %v1938, %v2040
        %v2042 = vpop.f32.mrf.mxu0
        %2043 = vmatprep.mubr.f32.mxu0 0.0
        %2044 = vmatmul.mubr.f32.gmra.mxu0 %v1950
        %v2045 = vpop.f32.mrf.mxu0
        %v2046 = vadd.f32 %v1938, %v2045
        %v2047 = vpop.f32.mrf.mxu0
        %2048 = vmatprep.mubr.f32.mxu0 0.0
        %2049 = vmatmul.mubr.f32.gmra.mxu0 %v1953
        %v2050 = vpop.f32.mrf.mxu0
        %v2051 = vadd.f32 %v1938, %v2050
        %v2052 = vpop.f32.mrf.mxu0
        %2053 = vmatprep.mubr.f32.mxu0 0.0
        %2054 = vmatmul.mubr.f32.gmra.mxu0 %v1956
        %v2055 = vpop.f32.mrf.mxu0
        %v2056 = vadd.f32 %v1938, %v2055
        %v2057 = vpop.f32.mrf.mxu0
        %2058 = vmatprep.mubr.f32.mxu0 0.0
        %2059 = vmatmul.mubr.f32.gmra.mxu0 %v1959
        %v2060 = vpop.f32.mrf.mxu0
        %v2061 = vadd.f32 %v1938, %v2060
        %v2062 = vpop.f32.mrf.mxu0
        %2063 = vmatprep.mubr.f32.mxu0 0.0
        %2064 = vmatmul.mubr.f32.gmra.mxu0 %v1962
        %v2065 = vpop.f32.mrf.mxu0
        %v2066 = vadd.f32 %v1938, %v2065
        %v2067 = vpop.f32.mrf.mxu0
        %2068 = vdwg.mxu0
        %v2069 = vmul.f32 %v2031, 0.12
        %v2070 = vmul.f32 %v2036, 0.12
        %v2071 = vmul.f32 %v2041, 0.12
        %v2072 = vmul.f32 %v2046, 0.12
        %v2073 = vmul.f32 %v2051, 0.12
        %v2074 = vmul.f32 %v2056, 0.12
        %v2075 = vmul.f32 %v2061, 0.12
        %v2076 = vmul.f32 %v2066, 0.12
        %v2077 = vmax.f32 %v2031, %v2069
        %v2078 = vmax.f32 %v2036, %v2070
        %v2079 = vmax.f32 %v2041, %v2071
        %v2080 = vmax.f32 %v2046, %v2072
        %v2081 = vmax.f32 %v2051, %v2073
        %v2082 = vmax.f32 %v2056, %v2074
        %v2083 = vmax.f32 %v2061, %v2075
        %v2084 = vmax.f32 %v2066, %v2076
        %v2085 = vsel %vm1290, %v2077, 0.0
        %v2086 = vrot.slane %v2085, 4
        %v2087 = vadd.f32 %v2085, %v2086
        %v2088 = vrot.slane %v2087, 2
        %v2089 = vadd.f32 %v2087, %v2088
        %v2090 = vrot.slane %v2089, 1
        %v2091 = vadd.f32 %v2089, %v2090
        %v2092 = vsel %vm1290, %v2078, 0.0
        %v2093 = vrot.slane %v2092, 4
        %v2094 = vadd.f32 %v2092, %v2093
        %v2095 = vrot.slane %v2094, 2
        %v2096 = vadd.f32 %v2094, %v2095
        %v2097 = vrot.slane %v2096, 1
        %v2098 = vadd.f32 %v2096, %v2097
        %v2099 = vsel %vm1290, %v2079, 0.0
        %v2100 = vrot.slane %v2099, 4
        %v2101 = vadd.f32 %v2099, %v2100
        %v2102 = vrot.slane %v2101, 2
        %v2103 = vadd.f32 %v2101, %v2102
        %v2104 = vrot.slane %v2103, 1
        %v2105 = vadd.f32 %v2103, %v2104
        %v2106 = vsel %vm1290, %v2080, 0.0
        %v2107 = vrot.slane %v2106, 4
        %v2108 = vadd.f32 %v2106, %v2107
        %v2109 = vrot.slane %v2108, 2
        %v2110 = vadd.f32 %v2108, %v2109
        %v2111 = vrot.slane %v2110, 1
        %v2112 = vadd.f32 %v2110, %v2111
        %v2113 = vsel %vm1290, %v2081, 0.0
        %v2114 = vrot.slane %v2113, 4
        %v2115 = vadd.f32 %v2113, %v2114
        %v2116 = vrot.slane %v2115, 2
        %v2117 = vadd.f32 %v2115, %v2116
        %v2118 = vrot.slane %v2117, 1
        %v2119 = vadd.f32 %v2117, %v2118
        %v2120 = vsel %vm1290, %v2082, 0.0
        %v2121 = vrot.slane %v2120, 4
        %v2122 = vadd.f32 %v2120, %v2121
        %v2123 = vrot.slane %v2122, 2
        %v2124 = vadd.f32 %v2122, %v2123
        %v2125 = vrot.slane %v2124, 1
        %v2126 = vadd.f32 %v2124, %v2125
        %v2127 = vsel %vm1290, %v2083, 0.0
        %v2128 = vrot.slane %v2127, 4
        %v2129 = vadd.f32 %v2127, %v2128
        %v2130 = vrot.slane %v2129, 2
        %v2131 = vadd.f32 %v2129, %v2130
        %v2132 = vrot.slane %v2131, 1
        %v2133 = vadd.f32 %v2131, %v2132
        %v2134 = vsel %vm1290, %v2084, 0.0
        %v2135 = vrot.slane %v2134, 4
        %v2136 = vadd.f32 %v2134, %v2135
        %v2137 = vrot.slane %v2136, 2
        %v2138 = vadd.f32 %v2136, %v2137
        %v2139 = vrot.slane %v2138, 1
        %v2140 = vadd.f32 %v2138, %v2139
        %v2149 = vsel %vm830, %v2098, %v2091
        %v2150 = vsel %vm831, %v2105, %v2149
        %v2151 = vsel %vm833, %v2112, %v2150
        %v2152 = vsel %vm835, %v2119, %v2151
        %v2153 = vsel %vm837, %v2126, %v2152
        %v2154 = vsel %vm839, %v2133, %v2153
        %v2155 = vsel %vm841, %v2140, %v2154
        %2156 = vrot.lane.b32.xlu0 %v2155, 32
        %v2157 = vpop.permute.xlu0 %2156
        %v2159 = vsel %vm1144, %v1531, %v2157
        %v2161 = vlaneseq
        %v2162 = vshrl.u32 %v2161, 7
        %v2163 = vsub.s32 0, %v2162
        %v2164 = vrot.slane %v1549, %v2163
        %vm2166 = vcmask 392192
        %v2168 = vsel %vm2166, %v2159, 0
        %2170 = vmatprep.subr.mxu0 0.0
        %2171 = vmatpush1.msra.mxu0 0.0
        %2172 = vmatprep.subr.mxu0 0.0
        %2173 = vmatpush1.msra.mxu0 0.0
        %2174 = vmatprep.subr.mxu0 0.0
        %2175 = vmatpush1.msra.mxu0 0.0
        %2176 = vmatprep.subr.mxu0 0.0
        %2177 = vmatpush1.msra.mxu0 0.0
        %2178 = vmatprep.subr.mxu0 0.0
        %2179 = vmatpush1.msra.mxu0 0.0
        %2180 = vmatprep.subr.mxu0 0.0
        %2181 = vmatpush1.msra.mxu0 0.0
        %2182 = vmatprep.subr.mxu0 0.0
        %2183 = vmatpush1.msra.mxu0 0.0
        %2184 = vmatprep.subr.mxu0 0.0
        %2185 = vmatpush1.msra.mxu0 0.0
        %2186 = vmatprep.subr.mxu0 0.0
        %2187 = vmatpush1.msra.mxu0 0.0
        %2188 = vmatprep.subr.mxu0 0.0
        %2189 = vmatpush1.msra.mxu0 0.0
        %2190 = vmatprep.subr.mxu0 0.0
        %2191 = vmatpush1.msra.mxu0 %v1548
        %2192 = vmatprep.subr.mxu0 0.0
        %2193 = vmatpush1.msra.mxu0 %v1547
        %2194 = vmatprep.subr.mxu0 0.0
        %2195 = vmatpush1.msra.mxu0 %v1546
        %2196 = vmatprep.subr.mxu0 0.0
        %2197 = vmatpush1.msra.mxu0 %v1545
        %2198 = vmatprep.subr.mxu0 0.0
        %2199 = vmatpush1.msra.mxu0 %v1544
        %2200 = vmatprep.subr.mxu0 0.0
        %2201 = vmatpush1.msra.mxu0 %v1543
        %2202 = vmatprep.subr.mxu0 0.0
        %2203 = vmatpush2.msra.mxu0 0.0
        %2204 = vmatprep.subr.mxu0 0.0
        %2205 = vmatpush2.msra.mxu0 0.0
        %2206 = vmatprep.subr.mxu0 0.0
        %2207 = vmatpush2.msra.mxu0 0.0
        %2208 = vmatprep.subr.mxu0 0.0
        %2209 = vmatpush2.msra.mxu0 0.0
        %2210 = vmatprep.subr.mxu0 0.0
        %2211 = vmatpush2.msra.mxu0 0.0
        %2212 = vmatprep.subr.mxu0 0.0
        %2213 = vmatpush2.msra.mxu0 0.0
        %2214 = vmatprep.subr.mxu0 0.0
        %2215 = vmatpush2.msra.mxu0 0.0
        %2216 = vmatprep.subr.mxu0 0.0
        %2217 = vmatpush2.msra.mxu0 0.0
        %2218 = vmatprep.subr.mxu0 0.0
        %2219 = vmatpush2.msra.mxu0 0.0
        %2220 = vmatprep.subr.mxu0 0.0
        %2221 = vmatpush2.msra.mxu0 0.0
        %2222 = vmatprep.subr.mxu0 0.0
        %2223 = vmatpush2.msra.mxu0 0.0
        %2224 = vmatprep.subr.mxu0 0.0
        %2225 = vmatpush2.msra.mxu0 0.0
        %2226 = vmatprep.subr.mxu0 0.0
        %2227 = vmatpush2.msra.mxu0 0.0
        %2228 = vmatprep.subr.mxu0 0.0
        %2229 = vmatpush2.msra.mxu0 0.0
        %2230 = vmatprep.subr.mxu0 0.0
        %2231 = vmatpush2.msra.mxu0 0.0
        %2232 = vmatprep.subr.mxu0 0.0
        %2233 = vmatpush2.msra.mxu0 0.0
        %2234 = vmatprep.mubr.f32.mxu0 0.0
        %2235 = vmatmul.mubr.f32.gmra.mxu0 %v2168
        %v2236 = vpop.f32.mrf.mxu0
        %v2237 = vadd.f32 %v2164, %v2236
        %v2238 = vpop.f32.mrf.mxu0
        %2239 = vdwg.mxu0
        %v2240 = vmul.f32 %v2237, 0.12
        %v2241 = vmax.f32 %v2237, %v2240
        %v2243 = vlaneseq
        %v2244 = vshrl.u32 %v2243, 7
        %v2245 = vsub.s32 0, %v2244
        %v2246 = vrot.slane %v1554, %v2245
        %v2249 = vsel %vm1144, %v2241, 0
        %2251 = vmatprep.subr.mxu0 0.0
        %2252 = vmatpush1.msra.mxu0 0.0
        %2253 = vmatprep.subr.mxu0 0.0
        %2254 = vmatpush1.msra.mxu0 0.0
        %2255 = vmatprep.subr.mxu0 0.0
        %2256 = vmatpush1.msra.mxu0 0.0
        %2257 = vmatprep.subr.mxu0 0.0
        %2258 = vmatpush1.msra.mxu0 0.0
        %2259 = vmatprep.subr.mxu0 0.0
        %2260 = vmatpush1.msra.mxu0 0.0
        %2261 = vmatprep.subr.mxu0 0.0
        %2262 = vmatpush1.msra.mxu0 0.0
        %2263 = vmatprep.subr.mxu0 0.0
        %2264 = vmatpush1.msra.mxu0 0.0
        %2265 = vmatprep.subr.mxu0 0.0
        %2266 = vmatpush1.msra.mxu0 0.0
        %2267 = vmatprep.subr.mxu0 0.0
        %2268 = vmatpush1.msra.mxu0 0.0
        %2269 = vmatprep.subr.mxu0 0.0
        %2270 = vmatpush1.msra.mxu0 0.0
        %2271 = vmatprep.subr.mxu0 0.0
        %2272 = vmatpush1.msra.mxu0 0.0
        %2273 = vmatprep.subr.mxu0 0.0
        %2274 = vmatpush1.msra.mxu0 0.0
        %2275 = vmatprep.subr.mxu0 0.0
        %2276 = vmatpush1.msra.mxu0 %v1553
        %2277 = vmatprep.subr.mxu0 0.0
        %2278 = vmatpush1.msra.mxu0 %v1552
        %2279 = vmatprep.subr.mxu0 0.0
        %2280 = vmatpush1.msra.mxu0 %v1551
        %2281 = vmatprep.subr.mxu0 0.0
        %2282 = vmatpush1.msra.mxu0 %v1550
        %2283 = vmatprep.subr.mxu0 0.0
        %2284 = vmatpush2.msra.mxu0 0.0
        %2285 = vmatprep.subr.mxu0 0.0
        %2286 = vmatpush2.msra.mxu0 0.0
        %2287 = vmatprep.subr.mxu0 0.0
        %2288 = vmatpush2.msra.mxu0 0.0
        %2289 = vmatprep.subr.mxu0 0.0
        %2290 = vmatpush2.msra.mxu0 0.0
        %2291 = vmatprep.subr.mxu0 0.0
        %2292 = vmatpush2.msra.mxu0 0.0
        %2293 = vmatprep.subr.mxu0 0.0
        %2294 = vmatpush2.msra.mxu0 0.0
        %2295 = vmatprep.subr.mxu0 0.0
        %2296 = vmatpush2.msra.mxu0 0.0
        %2297 = vmatprep.subr.mxu0 0.0
        %2298 = vmatpush2.msra.mxu0 0.0
        %2299 = vmatprep.subr.mxu0 0.0
        %2300 = vmatpush2.msra.mxu0 0.0
        %2301 = vmatprep.subr.mxu0 0.0
        %2302 = vmatpush2.msra.mxu0 0.0
        %2303 = vmatprep.subr.mxu0 0.0
        %2304 = vmatpush2.msra.mxu0 0.0
        %2305 = vmatprep.subr.mxu0 0.0
        %2306 = vmatpush2.msra.mxu0 0.0
        %2307 = vmatprep.subr.mxu0 0.0
        %2308 = vmatpush2.msra.mxu0 0.0
        %2309 = vmatprep.subr.mxu0 0.0
        %2310 = vmatpush2.msra.mxu0 0.0
        %2311 = vmatprep.subr.mxu0 0.0
        %2312 = vmatpush2.msra.mxu0 0.0
        %2313 = vmatprep.subr.mxu0 0.0
        %2314 = vmatpush2.msra.mxu0 0.0
        %2315 = vmatprep.mubr.f32.mxu0 0.0
        %2316 = vmatmul.mubr.f32.gmra.mxu0 %v2249
        %v2317 = vpop.f32.mrf.mxu0
        %v2318 = vadd.f32 %v2246, %v2317
        %v2319 = vpop.f32.mrf.mxu0
        %2320 = vdwg.mxu0
        %v2321 = vmul.f32 %v2318, 0.12
        %v2322 = vmax.f32 %v2318, %v2321
        %v2323 = vld [vmem:[%s19] sm:$0xff]
        %v2324 = vld [vmem:[%s19 + $0x8] sm:$0xff]
        %v2325 = vld [vmem:[%s19 + $0x10] sm:$0xff]
        %v2326 = vld [vmem:[%s19 + $0x18] sm:$0xff]
        %v2327 = vld [vmem:[%s20] sm:$0x1]
        %v2328 = vsel %vm1144, %v2322, 0.0
        %v2329 = vrot.slane %v2328, 4
        %v2330 = vadd.f32 %v2328, %v2329
        %v2331 = vrot.slane %v2330, 2
        %v2332 = vadd.f32 %v2330, %v2331
        %v2333 = vrot.slane %v2332, 1
        %v2334 = vadd.f32 %v2332, %v2333
        %v2335 = vmul.f32 %v2334, 0.125
        %v2337 = vsel %vm1144, %v2335, 0
        %2339 = vmatprep.subr.mxu0 0.0
        %2340 = vmatpush1.msra.mxu0 0.0
        %2341 = vmatprep.subr.mxu0 0.0
        %2342 = vmatpush1.msra.mxu0 0.0
        %2343 = vmatprep.subr.mxu0 0.0
        %2344 = vmatpush1.msra.mxu0 0.0
        %2345 = vmatprep.subr.mxu0 0.0
        %2346 = vmatpush1.msra.mxu0 0.0
        %2347 = vmatprep.subr.mxu0 0.0
        %2348 = vmatpush1.msra.mxu0 0.0
        %2349 = vmatprep.subr.mxu0 0.0
        %2350 = vmatpush1.msra.mxu0 0.0
        %2351 = vmatprep.subr.mxu0 0.0
        %2352 = vmatpush1.msra.mxu0 0.0
        %2353 = vmatprep.subr.mxu0 0.0
        %2354 = vmatpush1.msra.mxu0 0.0
        %2355 = vmatprep.subr.mxu0 0.0
        %2356 = vmatpush1.msra.mxu0 0.0
        %2357 = vmatprep.subr.mxu0 0.0
        %2358 = vmatpush1.msra.mxu0 0.0
        %2359 = vmatprep.subr.mxu0 0.0
        %2360 = vmatpush1.msra.mxu0 0.0
        %2361 = vmatprep.subr.mxu0 0.0
        %2362 = vmatpush1.msra.mxu0 0.0
        %2363 = vmatprep.subr.mxu0 0.0
        %2364 = vmatpush1.msra.mxu0 %v2326
        %2365 = vmatprep.subr.mxu0 0.0
        %2366 = vmatpush1.msra.mxu0 %v2325
        %2367 = vmatprep.subr.mxu0 0.0
        %2368 = vmatpush1.msra.mxu0 %v2324
        %2369 = vmatprep.subr.mxu0 0.0
        %2370 = vmatpush1.msra.mxu0 %v2323
        %2371 = vmatprep.subr.mxu0 0.0
        %2372 = vmatpush2.msra.mxu0 0.0
        %2373 = vmatprep.subr.mxu0 0.0
        %2374 = vmatpush2.msra.mxu0 0.0
        %2375 = vmatprep.subr.mxu0 0.0
        %2376 = vmatpush2.msra.mxu0 0.0
        %2377 = vmatprep.subr.mxu0 0.0
        %2378 = vmatpush2.msra.mxu0 0.0
        %2379 = vmatprep.subr.mxu0 0.0
        %2380 = vmatpush2.msra.mxu0 0.0
        %2381 = vmatprep.subr.mxu0 0.0
        %2382 = vmatpush2.msra.mxu0 0.0
        %2383 = vmatprep.subr.mxu0 0.0
        %2384 = vmatpush2.msra.mxu0 0.0
        %2385 = vmatprep.subr.mxu0 0.0
        %2386 = vmatpush2.msra.mxu0 0.0
        %2387 = vmatprep.subr.mxu0 0.0
        %2388 = vmatpush2.msra.mxu0 0.0
        %2389 = vmatprep.subr.mxu0 0.0
        %2390 = vmatpush2.msra.mxu0 0.0
        %2391 = vmatprep.subr.mxu0 0.0
        %2392 = vmatpush2.msra.mxu0 0.0
        %2393 = vmatprep.subr.mxu0 0.0
        %2394 = vmatpush2.msra.mxu0 0.0
        %2395 = vmatprep.subr.mxu0 0.0
        %2396 = vmatpush2.msra.mxu0 0.0
        %2397 = vmatprep.subr.mxu0 0.0
        %2398 = vmatpush2.msra.mxu0 0.0
        %2399 = vmatprep.subr.mxu0 0.0
        %2400 = vmatpush2.msra.mxu0 0.0
        %2401 = vmatprep.subr.mxu0 0.0
        %2402 = vmatpush2.msra.mxu0 0.0
        %2403 = vmatprep.mubr.f32.mxu0 0.0
        %2404 = vmatmul.mubr.f32.gmra.mxu0 %v2337
        %v2405 = vpop.f32.mrf.mxu0
        %v2406 = vadd.f32 %v2327, %v2405
        %v2407 = vpop.f32.mrf.mxu0
        %2408 = vdwg.mxu0
        %2409 = vst [vmem:[%s722] sm:$0x1] %v2406
        %s2410 = sand.u32 %s493, 1
        %s2411 = scalar_lea.sflag [#allocation4], %s2410
        %s2412 = sand.u32 %s493, 1
        %s2413 = scalar_lea.vmem [#allocation13], %s2412
        // Predicated region
        $region129: #{tpu_custom_call.1} parent=103 // pred_check
          %p2414 = pneg %p503
        $region130: #{tpu_custom_call.1} parent=103 // pred_check_branch
          %2416 = sbr.rel (%p2414) target = $region132
        $region131: #{tpu_custom_call.1} parent=103 // pred_region
          %s2418 = ssub.s32 16, 16
          %2419 = vsyncadd %s2411, %s2418
          %s2420 = smul.addr %s39, 16
          %s2421 = scalar_lea.hbm %s21, %s2420
          %s2423 = sshll.u32 %s2413, 4
          %s2424 = int_to_ptr.vmem [resolvable:$true] %s2423
          %2426 = dma.vmem_to_hbm [thread:$0]  %s2424, 16, %s2421, %s2411
        $region132: #{tpu_custom_call.1} parent=103 // pred_fallthru
          _
      $region104: #{tpu_custom_call.1} parent=5 // pred_fallthru
        _
      %p2427 = scmp.le.s32.totalorder 2, %s34
      // Predicated region
      $region133: #{tpu_custom_call.1} parent=5 // pred_check
        %p2428 = pneg %p2427
      $region134: #{tpu_custom_call.1} parent=5 // pred_check_branch
        %2430 = sbr.rel (%p2428) target = $region136
      $region135: #{tpu_custom_call.1} parent=5 // pred_region
        %s2431 = ssub.s32 %s34, 2
        // Predicated region
        $region137: #{tpu_custom_call.1} parent=135 // pred_check
          %p2432 = pneg %p509
        $region138: #{tpu_custom_call.1} parent=135 // pred_check_branch
          %2434 = sbr.rel (%p2432) target = $region140
        $region139: #{tpu_custom_call.1} parent=135 // pred_region
          %s2435 = sand.u32 %s494, 1
          %s2436 = scalar_lea.sflag [#allocation4], %s2435
          %s2437 = sand.u32 %s494, 1
          %s2438 = scalar_lea.vmem [#allocation13], %s2437
          %2439 = dma.done %s2436, 16
        $region140: #{tpu_custom_call.1} parent=135 // pred_fallthru
          _
      $region136: #{tpu_custom_call.1} parent=5 // pred_fallthru
        _
    $region6: #{tpu_custom_call.1} parent=1 // loop_footer
      %s38 = sadd.s32 1, %s34
    $region7: #{tpu_custom_call.1} parent=1 // loop_footer_branch
      %33 = sbr.rel target = $region3
    $region8: #{tpu_custom_call.1} parent=1 // loop_exit
      _
    %2440 = vsyncpa [#allocation3], 1
    %s2441 = scalar_lea.sflag [#allocation3], 1
    %2442 = vsyncpa %s2441, 1
    %2443 = vsyncpa [#allocation6], 1
    %2444 = vsyncpa [#allocation9], 1
    %2445 = vsyncpa [#allocation12], 1
    %2446 = vsyncpa [#allocation4], 1
    %s2447 = scalar_lea.sflag [#allocation4], 1
    %2448 = vsyncpa %s2447, 1

</llo_original>
